<compile_context>
chip_gen: v7x
topology: tpu7x:2x2x1
jax: 0.10.0
libtpu: 0.0.40
codegen_flags: <defaults>
</compile_context>

<pallas_src>
import jax
import jax.numpy as jnp
from jax import lax
from jax.experimental import pallas as pl
from jax.experimental.pallas import tpu as pltpu


def _autoencoder_kernel(x_ref, w_ref, be_ref, bd_ref, o_ref):
    x_bf = x_ref[...].astype(jnp.bfloat16)     # (TB, d_in)
    w_bf = w_ref[...]                          # (d_h, d_in) already bf16

    # Encoder: x @ W_e.T == contract dim 1 of x with dim 1 of W_e (no transpose).
    h = lax.dot_general(
        x_bf, w_bf,
        dimension_numbers=(((1,), (1,)), ((), ())),
        preferred_element_type=jnp.float32,
    )
    h = jnp.maximum(h + be_ref[...], 0.0)      # (TB, d_h) f32

    # Decoder (tied weights): h @ W_e + b_d.
    z = lax.dot_general(
        h.astype(jnp.bfloat16), w_bf,
        dimension_numbers=(((1,), (0,)), ((), ())),
        preferred_element_type=jnp.float32,
    ) + bd_ref[...]

    # sigmoid(z) = 0.5 * tanh(0.5 * z) + 0.5  -- single EUP op per output vreg.
    o_ref[...] = (0.5 * jnp.tanh(0.5 * z) + 0.5).astype(o_ref.dtype)


def _pick_batch_tile(B, block_b):
    """Largest tile <= block_b that divides B (prefers sublane-aligned tiles)."""
    if B <= block_b:
        return B
    top = min(block_b, B)
    # Prefer tiles that are multiples of 8 (sublane-aligned stores).
    for tb in range(top - (top % 8), 7, -8):
        if tb > 0 and B % tb == 0:
            return tb
    # Any divisor at all (keeps us off the jnp.pad path).
    for tb in range(top, 0, -1):
        if B % tb == 0:
            return tb
    return top  # unreachable (tb=1 always divides), kept for safety


def autoencoder_forward(x, w_enc, b_enc, b_dec, *, block_b=512):
    """x: (B, d_in); w_enc: (d_h, d_in); b_enc: (d_h,); b_dec: (d_in,)."""
    B, d_in = x.shape
    d_h = w_enc.shape[0]

    tb = _pick_batch_tile(B, block_b)
    n_blocks = B // tb
    assert n_blocks * tb == B  # no padding pass: tile divides the batch

    # Pre-cast the weight once (resident in VMEM across all grid steps).
    w_bf = w_enc.astype(jnp.bfloat16)

    # Keep biases 2-D so they map cleanly onto vregs; broadcast in-kernel.
    b_enc2 = b_enc.reshape(1, d_h)
    b_dec2 = b_dec.reshape(1, d_in)

    # Scoped-VMEM estimate: double-buffered x + out blocks (f32), resident bf16
    # weight (double-buffered allocation to be safe), biases, plus headroom for
    # the f32 intermediates (h, z).
    vmem_bytes = (
        2 * 2 * tb * d_in * 4          # x and out blocks, 2-deep each
        + 2 * d_h * d_in * 2           # bf16 weight
        + 2 * (d_h + d_in) * 4         # biases
        + tb * (d_h + d_in) * 4        # h and z intermediates
        + (2 << 20)                    # slack
    )
    compiler_kwargs = dict(dimension_semantics=("parallel",))
    if vmem_bytes > (16 << 20):        # v5e default scoped VMEM is 16 MiB
        compiler_kwargs["vmem_limit_bytes"] = int(vmem_bytes)

    out = pl.pallas_call(
        _autoencoder_kernel,
        out_shape=jax.ShapeDtypeStruct((B, d_in), x.dtype),
        grid_spec=pl.GridSpec(
            grid=(n_blocks,),
            in_specs=[
                pl.BlockSpec((tb, d_in), lambda i: (i, 0)),    # x: tiled over batch
                pl.BlockSpec((d_h, d_in), lambda i: (0, 0)),   # W_e (bf16): resident
                pl.BlockSpec((1, d_h), lambda i: (0, 0)),      # b_e: resident
                pl.BlockSpec((1, d_in), lambda i: (0, 0)),     # b_d: resident
            ],
            out_specs=pl.BlockSpec((tb, d_in), lambda i: (i, 0)),
        ),
        compiler_params=pltpu.CompilerParams(**compiler_kwargs),
    )(x, w_bf, b_enc2, b_dec2)

    return out


def autoencoder_reference(x, w_enc, b_enc, b_dec):
    h = jnp.maximum(x @ w_enc.T + b_enc, 0.0)
    z = h @ w_enc + b_dec
    return 1.0 / (1.0 + jnp.exp(-z))


if __name__ == "__main__":
    # Shapes consistent with the module's forward (flattened-vector input).
    # Batch large enough to exercise the enlarged batch tile (2 steps of 512).
    B, d_in, d_h = 1024, 256, 64

    key = jax.random.PRNGKey(0)
    kx, kw, kbe, kbd = jax.random.split(key, 4)

    # Deterministic synthetic parameters (PyTorch-Linear-like uniform scale).
    bound_e = 1.0 / jnp.sqrt(d_in)
    bound_d = 1.0 / jnp.sqrt(d_h)
    x = jax.random.uniform(kx, (B, d_in), jnp.float32)              # "image" in [0,1)
    w_enc = jax.random.uniform(kw, (d_h, d_in), jnp.float32,
                               minval=-bound_e, maxval=bound_e)
    b_enc = jax.random.uniform(kbe, (d_h,), jnp.float32,
                               minval=-bound_e, maxval=bound_e)
    b_dec = jax.random.uniform(kbd, (d_in,), jnp.float32,
                               minval=-bound_d, maxval=bound_d)

    out = autoencoder_forward(x, w_enc, b_enc, b_dec)
    out = jax.block_until_ready(out)

    # f32 reference; tolerance accounts for bf16 MXU inputs (sigmoid is exact).
    ref = autoencoder_reference(x, w_enc, b_enc, b_dec)
    assert out.shape == (B, d_in)
    assert jnp.allclose(out, ref, atol=2e-2, rtol=2e-2), "mismatch vs reference"

    print("KERNEL_OK")
</pallas_src>

<mosaic_0001>
module attributes {stable_mosaic.version = 11 : i64} {
  func.func @_autoencoder_kernel(%arg0: i32, %arg1: memref<512x256xf32, #tpu.memory_space<vmem>>, %arg2: memref<64x256xbf16, #tpu.memory_space<vmem>>, %arg3: memref<1x64xf32, #tpu.memory_space<vmem>>, %arg4: memref<1x256xf32, #tpu.memory_space<vmem>>, %arg5: memref<512x256xf32, #tpu.memory_space<vmem>>) attributes {dimension_semantics = [#tpu.dimension_semantics<parallel>], iteration_bounds = array<i64: 2>, scalar_prefetch = 0 : i64, scratch_operands = 0 : i64, tpu.core_type = #tpu.core_type<tc>, window_params = [{transform_indices = @transform_0, window_bounds = array<i64: 512, 256>}, {pipeline_mode = #tpu.pipeline_mode<synchronous>, transform_indices = @transform_1, window_bounds = array<i64: 64, 256>}, {pipeline_mode = #tpu.pipeline_mode<synchronous>, transform_indices = @transform_2, window_bounds = array<i64: 1, 64>}, {pipeline_mode = #tpu.pipeline_mode<synchronous>, transform_indices = @transform_3, window_bounds = array<i64: 1, 256>}, {transform_indices = @transform_4, window_bounds = array<i64: 512, 256>}]} {
    %c0 = arith.constant 0 : index
    %c0_0 = arith.constant 0 : index
    %0 = vector.load %arg1[%c0, %c0_0] : memref<512x256xf32, #tpu.memory_space<vmem>>, vector<512x256xf32>
    %1 = arith.truncf %0 : vector<512x256xf32> to vector<512x256xbf16>
    %c0_1 = arith.constant 0 : index
    %c0_2 = arith.constant 0 : index
    %2 = vector.load %arg2[%c0_1, %c0_2] : memref<64x256xbf16, #tpu.memory_space<vmem>>, vector<64x256xbf16>
    %cst = arith.constant dense<0.000000e+00> : vector<512x64xf32>
    %3 = tpu.matmul %1, %2, %cst {dimension_numbers = #tpu.dot_dimension_numbers<[1], [1], [0], [0], [0, 0, 1, 0], [], []>} : vector<512x256xbf16>, vector<64x256xbf16>, vector<512x64xf32> -> vector<512x64xf32>
    %c0_3 = arith.constant 0 : index
    %c0_4 = arith.constant 0 : index
    %4 = vector.load %arg3[%c0_3, %c0_4] : memref<1x64xf32, #tpu.memory_space<vmem>>, vector<1x64xf32>
    %5 = vector.broadcast %4 : vector<1x64xf32> to vector<512x64xf32>
    %6 = arith.addf %3, %5 : vector<512x64xf32>
    %cst_5 = arith.constant 0.000000e+00 : f32
    %7 = vector.broadcast %cst_5 : f32 to vector<512x64xf32>
    %8 = arith.maximumf %6, %7 : vector<512x64xf32>
    %9 = arith.truncf %8 : vector<512x64xf32> to vector<512x64xbf16>
    %cst_6 = arith.constant dense<0.000000e+00> : vector<512x256xf32>
    %10 = tpu.matmul %9, %2, %cst_6 {dimension_numbers = #tpu.dot_dimension_numbers<[1], [0], [0], [1], [0, 0, 1, 1], [], []>} : vector<512x64xbf16>, vector<64x256xbf16>, vector<512x256xf32> -> vector<512x256xf32>
    %c0_7 = arith.constant 0 : index
    %c0_8 = arith.constant 0 : index
    %11 = vector.load %arg4[%c0_7, %c0_8] : memref<1x256xf32, #tpu.memory_space<vmem>>, vector<1x256xf32>
    %12 = vector.broadcast %11 : vector<1x256xf32> to vector<512x256xf32>
    %13 = arith.addf %10, %12 : vector<512x256xf32>
    %cst_9 = arith.constant 5.000000e-01 : f32
    %14 = vector.broadcast %cst_9 : f32 to vector<512x256xf32>
    %15 = arith.mulf %14, %13 : vector<512x256xf32>
    %16 = math.tanh %15 : vector<512x256xf32>
    %cst_10 = arith.constant 5.000000e-01 : f32
    %17 = vector.broadcast %cst_10 : f32 to vector<512x256xf32>
    %18 = arith.mulf %17, %16 : vector<512x256xf32>
    %cst_11 = arith.constant 5.000000e-01 : f32
    %19 = vector.broadcast %cst_11 : f32 to vector<512x256xf32>
    %20 = arith.addf %18, %19 : vector<512x256xf32>
    %c0_12 = arith.constant 0 : index
    %c0_13 = arith.constant 0 : index
    %21 = vector.load %arg5[%c0_12, %c0_13] : memref<512x256xf32, #tpu.memory_space<vmem>>, vector<512x256xf32>
    tpu.vector_store %arg5[%c0_12, %c0_13], %20 {strides = array<i32>} : memref<512x256xf32, #tpu.memory_space<vmem>>, vector<512x256xf32>,
    return
  }
  func.func @transform_0(%arg0: i32) -> (i32, i32) {
    %c0_i32 = arith.constant 0 : i32
    %c0_i32_0 = arith.constant 0 : i32
    return %arg0, %c0_i32 : i32, i32
  }
  func.func @transform_1(%arg0: i32) -> (i32, i32) {
    %c0_i32 = arith.constant 0 : i32
    %c0_i32_0 = arith.constant 0 : i32
    %c0_i32_1 = arith.constant 0 : i32
    return %c0_i32, %c0_i32_0 : i32, i32
  }
  func.func @transform_2(%arg0: i32) -> (i32, i32) {
    %c0_i32 = arith.constant 0 : i32
    %c0_i32_0 = arith.constant 0 : i32
    %c0_i32_1 = arith.constant 0 : i32
    return %c0_i32, %c0_i32_0 : i32, i32
  }
  func.func @transform_3(%arg0: i32) -> (i32, i32) {
    %c0_i32 = arith.constant 0 : i32
    %c0_i32_0 = arith.constant 0 : i32
    %c0_i32_1 = arith.constant 0 : i32
    return %c0_i32, %c0_i32_0 : i32, i32
  }
  func.func @transform_4(%arg0: i32) -> (i32, i32) {
    %c0_i32 = arith.constant 0 : i32
    %c0_i32_0 = arith.constant 0 : i32
    return %arg0, %c0_i32 : i32, i32
  }
}

</mosaic_0001>

<llo_original>
// kernel: tpu_custom_call.1
$region0: #{tpu_custom_call.1}
  #allocation0 [shape = 'u32[]', space=smem, size = 0x4, offset = 0x4, fixed_abs, tag = 'smem constant byte address 0x4 - core index']
  #allocation1 [shape = 'u32[144,128]{1,0:T(1,128)}', space=vmem, size = 0x12000, scoped, tag = 'internal scratch']
  %s0 = inlined_call_operand.hbm [shape: f32[1024,256], index: 0, kind: input, shape index: {}]
  %s1 = inlined_call_operand.hbm [shape: bf16[64,256], index: 1, kind: input, shape index: {}]
  %s2 = inlined_call_operand.vmem [shape: f32[1,64], index: 2, kind: input, shape index: {}]
  %s3 = inlined_call_operand.vmem [shape: f32[1,256], index: 3, kind: input, shape index: {}]
  %s4 = inlined_call_operand.hbm [shape: f32[1024,256], index: 4, kind: output, shape index: {}]
  %s5 = sld [smem:[#allocation0]]
  $region57: #{tpu_custom_call.1} parent=0
    _
  %s7 = ssub.s32 1, %s5
  %s8 = scalar_select 0, %s7, %s5
  $region1: #{tpu_custom_call.1} parent=0
    #allocation2 [shape = 'u8[1048576]{0}', space=vmem, size = 0x100000, scoped, tag = 'input window, operand 0']
    #allocation3 [shape = 's32[2]{0}', space=sflag, size = 0x8, scoped, tag = 'scoped memory for tpu_custom_call.1']
    #allocation4 [shape = 's32[2]{0}', space=sflag, size = 0x8, scoped, tag = 'scoped memory for tpu_custom_call.1']
    #allocation5 [shape = 'u8[32768]{0}', space=vmem, size = 0x8000, scoped, tag = 'input window, operand 1, single buffered']
    #allocation6 [shape = 's32[1]{0}', space=sflag, size = 0x4, scoped, tag = 'scoped memory for tpu_custom_call.1']
    #allocation7 [shape = 'u8[1048576]{0}', space=vmem, size = 0x100000, scoped, tag = 'output window, operand 0']
    %9 = vsyncpa [#allocation3], 0
    %s10 = scalar_lea.sflag [#allocation3], 1
    %11 = vsyncpa %s10, 0
    %12 = vsyncpa [#allocation6], 0
    %13 = vsyncpa [#allocation4], 0
    %s14 = scalar_lea.sflag [#allocation4], 1
    %15 = vsyncpa %s14, 0
    loop: start=0, step=1, limit=4
    $region2: #{tpu_custom_call.1} parent=1 // loop_pre_header
      _
    $region3: #{tpu_custom_call.1} parent=1 // loop_header
      %s17 = sphi 0, %s21
      %p18 = scmp.ge.s32.totalorder %s17, 4
      %s27 = sphi 0, %s29
      %s30 = sphi 0, %s27
      %s31 = sphi 0, %s30
      %s47 = sphi 0, %s31
      %s51 = sphi 0, %s51
      %s53 = sphi 0, %s51
      %s54 = sphi 0, %s53
      %s68 = sphi 0, %s54
      %s72 = sphi 0, %s72
      %s74 = sphi 0, %s72
      %s75 = sphi 0, %s74
      %s89 = sphi 0, %s75
      %s93 = sphi 0, %s93
      %s95 = sphi 0, %s93
      %s96 = sphi 0, %s95
      %s110 = sphi 0, %s96
      %s116 = sphi 0, %s118
      %s119 = sphi 0, %s116
      %s120 = sphi 0, %s119
      %s136 = sphi 0, %s120
    $region4: #{tpu_custom_call.1} parent=1 // loop_header_branch
      %20 = sbr.rel (%p18) target = $region8
    $region5: #{tpu_custom_call.1} parent=1 // loop_body
      %s22 = ssub.s32 %s17, 1
      %s23 = ssub.s32 %s17, 2
      %s24 = sadd.s32 %s17, 1
      %s25 = ssub.s32 %s17, %s24
      %p26 = scmp.eq.s32.totalorder %s25, 0
      %s28 = sadd.s32 %s27, 1
      %s29 = scalar_select %p26, %s27, %s28
      %p32 = pneg %p26
      %p33 = scmp.eq.s32.totalorder %s17, 1
      %p34 = por %p32, %p33
      %p35 = scmp.ne.s32.totalorder %s27, %s30
      %p36 = scmp.eq.s32.totalorder %s17, 0
      %p37 = por %p35, %p36
      %p38 = scmp.ne.s32.totalorder %s27, %s30
      %p39 = scmp.eq.s32.totalorder %s22, 1
      %p40 = por %p38, %p39
      %p41 = scmp.ne.s32.totalorder %s30, %s31
      %p42 = scmp.eq.s32.totalorder %s22, 0
      %p43 = por %p41, %p42
      %p44 = scmp.ne.s32.totalorder %s30, %s31
      %p45 = scmp.eq.s32.totalorder %s23, 1
      %p46 = por %p44, %p45
      %p48 = scmp.ne.s32.totalorder %s31, %s47
      %p49 = scmp.eq.s32.totalorder %s23, 0
      %p50 = por %p48, %p49
      %s52 = sadd.s32 %s51, 1
      %p55 = scmp.eq.s32.totalorder %s17, 1
      %p56 = scmp.ne.s32.totalorder %s51, %s53
      %p57 = scmp.eq.s32.totalorder %s17, 0
      %p58 = por %p56, %p57
      %p59 = scmp.ne.s32.totalorder %s51, %s53
      %p60 = scmp.eq.s32.totalorder %s22, 1
      %p61 = por %p59, %p60
      %p62 = scmp.ne.s32.totalorder %s53, %s54
      %p63 = scmp.eq.s32.totalorder %s22, 0
      %p64 = por %p62, %p63
      %p65 = scmp.ne.s32.totalorder %s53, %s54
      %p66 = scmp.eq.s32.totalorder %s23, 1
      %p67 = por %p65, %p66
      %p69 = scmp.ne.s32.totalorder %s54, %s68
      %p70 = scmp.eq.s32.totalorder %s23, 0
      %p71 = por %p69, %p70
      %s73 = sadd.s32 %s72, 1
      %p76 = scmp.eq.s32.totalorder %s17, 1
      %p77 = scmp.ne.s32.totalorder %s72, %s74
      %p78 = scmp.eq.s32.totalorder %s17, 0
      %p79 = por %p77, %p78
      %p80 = scmp.ne.s32.totalorder %s72, %s74
      %p81 = scmp.eq.s32.totalorder %s22, 1
      %p82 = por %p80, %p81
      %p83 = scmp.ne.s32.totalorder %s74, %s75
      %p84 = scmp.eq.s32.totalorder %s22, 0
      %p85 = por %p83, %p84
      %p86 = scmp.ne.s32.totalorder %s74, %s75
      %p87 = scmp.eq.s32.totalorder %s23, 1
      %p88 = por %p86, %p87
      %p90 = scmp.ne.s32.totalorder %s75, %s89
      %p91 = scmp.eq.s32.totalorder %s23, 0
      %p92 = por %p90, %p91
      %s94 = sadd.s32 %s93, 1
      %p97 = scmp.eq.s32.totalorder %s17, 1
      %p98 = scmp.ne.s32.totalorder %s93, %s95
      %p99 = scmp.eq.s32.totalorder %s17, 0
      %p100 = por %p98, %p99
      %p101 = scmp.ne.s32.totalorder %s93, %s95
      %p102 = scmp.eq.s32.totalorder %s22, 1
      %p103 = por %p101, %p102
      %p104 = scmp.ne.s32.totalorder %s95, %s96
      %p105 = scmp.eq.s32.totalorder %s22, 0
      %p106 = por %p104, %p105
      %p107 = scmp.ne.s32.totalorder %s95, %s96
      %p108 = scmp.eq.s32.totalorder %s23, 1
      %p109 = por %p107, %p108
      %p111 = scmp.ne.s32.totalorder %s96, %s110
      %p112 = scmp.eq.s32.totalorder %s23, 0
      %p113 = por %p111, %p112
      %s114 = ssub.s32 %s17, %s24
      %p115 = scmp.eq.s32.totalorder %s114, 0
      %s117 = sadd.s32 %s116, 1
      %s118 = scalar_select %p115, %s116, %s117
      %p121 = pneg %p115
      %p122 = scmp.eq.s32.totalorder %s17, 1
      %p123 = por %p121, %p122
      %p124 = scmp.ne.s32.totalorder %s116, %s119
      %p125 = scmp.eq.s32.totalorder %s17, 0
      %p126 = por %p124, %p125
      %p127 = scmp.ne.s32.totalorder %s116, %s119
      %p128 = scmp.eq.s32.totalorder %s22, 1
      %p129 = por %p127, %p128
      %p130 = scmp.ne.s32.totalorder %s119, %s120
      %p131 = scmp.eq.s32.totalorder %s22, 0
      %p132 = por %p130, %p131
      %p133 = scmp.ne.s32.totalorder %s119, %s120
      %p134 = scmp.eq.s32.totalorder %s23, 1
      %p135 = por %p133, %p134
      %p137 = scmp.ne.s32.totalorder %s120, %s136
      %p138 = scmp.eq.s32.totalorder %s23, 0
      %p139 = por %p137, %p138
      %p140 = scmp.le.s32.totalorder 1, %s17
      %p141 = scmp.lt.s32.totalorder %s17, 3
      %p142 = pnand %p140, %p141
      %p143 = pneg %p142
      // Predicated region
      $region9: #{tpu_custom_call.1} parent=5 // pred_check
        _
      $region10: #{tpu_custom_call.1} parent=5 // pred_check_branch
        %145 = sbr.rel (%p142) target = $region12
      $region11: #{tpu_custom_call.1} parent=5 // pred_region
        %s146 = ssub.s32 %s17, 1
        // Predicated region
        $region13: #{tpu_custom_call.1} parent=11 // pred_check
          %p147 = pneg %p64
        $region14: #{tpu_custom_call.1} parent=11 // pred_check_branch
          %149 = sbr.rel (%p147) target = $region16
        $region15: #{tpu_custom_call.1} parent=11 // pred_region
          %s151 = ssub.s32 1024, 1024
          %152 = vsyncadd [#allocation6], %s151
          %s153 = sshll.u32 [#allocation5], 4
          %s154 = int_to_ptr.vmem [resolvable:$true] %s153
          %159 = dma.hbm_to_vmem [thread:$0]  %s1, 1024, %s154, [#allocation6], 128, 128, 8
        $region16: #{tpu_custom_call.1} parent=11 // pred_fallthru
          _
        // Predicated region
        $region17: #{tpu_custom_call.1} parent=11 // pred_check
          %p160 = pneg %p85
        $region18: #{tpu_custom_call.1} parent=11 // pred_check_branch
          %162 = sbr.rel (%p160) target = $region20
        $region19: #{tpu_custom_call.1} parent=11 // pred_region
          _
        $region20: #{tpu_custom_call.1} parent=11 // pred_fallthru
          _
        // Predicated region
        $region21: #{tpu_custom_call.1} parent=11 // pred_check
          %p163 = pneg %p106
        $region22: #{tpu_custom_call.1} parent=11 // pred_check_branch
          %165 = sbr.rel (%p163) target = $region24
        $region23: #{tpu_custom_call.1} parent=11 // pred_region
          _
        $region24: #{tpu_custom_call.1} parent=11 // pred_fallthru
          _
      $region12: #{tpu_custom_call.1} parent=5 // pred_fallthru
        _
      %p166 = scmp.lt.s32.totalorder %s17, 2
      // Predicated region
      $region25: #{tpu_custom_call.1} parent=5 // pred_check
        %p167 = pneg %p166
      $region26: #{tpu_custom_call.1} parent=5 // pred_check_branch
        %169 = sbr.rel (%p167) target = $region28
      $region27: #{tpu_custom_call.1} parent=5 // pred_region
        // Predicated region
        $region29: #{tpu_custom_call.1} parent=27 // pred_check
          %p170 = pneg %p37
        $region30: #{tpu_custom_call.1} parent=27 // pred_check_branch
          %172 = sbr.rel (%p170) target = $region32
        $region31: #{tpu_custom_call.1} parent=27 // pred_region
          %s173 = sand.u32 %s27, 1
          %s174 = scalar_lea.sflag [#allocation3], %s173
          %s175 = sand.u32 %s27, 1
          %s176 = smul.addr %s175, 1024
          %s177 = scalar_lea.vmem [#allocation2], %s176
          %s178 = smul.u32 64, %s17
          %s180 = ssub.s32 16384, 16384
          %181 = vsyncadd %s174, %s180
          %s182 = smul.addr %s178, 2
          %s183 = smul.addr %s182, 128
          %s184 = scalar_lea.hbm %s0, %s183
          %s185 = sshll.u32 %s177, 4
          %s186 = int_to_ptr.vmem [resolvable:$true] %s185
          %191 = dma.hbm_to_vmem [thread:$0]  %s184, 16384, %s186, %s174, 256, 256, 16
        $region32: #{tpu_custom_call.1} parent=27 // pred_fallthru
          _
      $region28: #{tpu_custom_call.1} parent=5 // pred_fallthru
        _
      %p192 = scmp.le.s32.totalorder 1, %s17
      %p193 = scmp.lt.s32.totalorder %s17, 3
      %p194 = pnand %p192, %p193
      %p195 = pneg %p194
      // Predicated region
      $region33: #{tpu_custom_call.1} parent=5 // pred_check
        _
      $region34: #{tpu_custom_call.1} parent=5 // pred_check_branch
        %197 = sbr.rel (%p194) target = $region36
      $region35: #{tpu_custom_call.1} parent=5 // pred_region
        %s198 = ssub.s32 %s17, 1
        %s199 = sand.u32 %s30, 1
        %s200 = scalar_lea.sflag [#allocation3], %s199
        %s201 = sand.u32 %s30, 1
        %s202 = smul.addr %s201, 1024
        %s203 = scalar_lea.vmem [#allocation2], %s202
        // Predicated region
        $region37: #{tpu_custom_call.1} parent=35 // pred_check
          %p204 = pneg %p43
        $region38: #{tpu_custom_call.1} parent=35 // pred_check_branch
          %206 = sbr.rel (%p204) target = $region40
        $region39: #{tpu_custom_call.1} parent=35 // pred_region
          %207 = dma.done %s200, 16384
        $region40: #{tpu_custom_call.1} parent=35 // pred_fallthru
          _
        // Predicated region
        $region41: #{tpu_custom_call.1} parent=35 // pred_check
          %p208 = pneg %p64
        $region42: #{tpu_custom_call.1} parent=35 // pred_check_branch
          %210 = sbr.rel (%p208) target = $region44
        $region43: #{tpu_custom_call.1} parent=35 // pred_region
          %211 = dma.done [#allocation6], 1024
        $region44: #{tpu_custom_call.1} parent=35 // pred_fallthru
          _
        %s212 = sand.u32 %s30, 1
        %s213 = scalar_lea.sflag [#allocation3], %s212
        %s214 = sand.u32 %s30, 1
        %s215 = smul.addr %s214, 1024
        %s216 = scalar_lea.vmem [#allocation2], %s215
        %p217 = pneg %p43
        %p218 = pneg %p40
        %p219 = pneg %p64
        %p220 = pneg %p61
        %p221 = pneg %p85
        %p222 = pneg %p82
        %p223 = pneg %p106
        %p224 = pneg %p103
        %p225 = pneg %p132
        %p226 = pneg %p129
        %s227 = sand.u32 %s119, 1
        %s228 = scalar_lea.sflag [#allocation4], %s227
        %s229 = sand.u32 %s119, 1
        %s230 = smul.addr %s229, 1024
        %s231 = scalar_lea.vmem [#allocation7], %s230
        %s232 = smul.u32 64, %s22
        %s233 = smul.u32 64, %s22
        %v235 = vld [vmem:[%s203] sm:$0xff]
        %v236 = vld [vmem:[%s203 + $0x8] sm:$0xff]
        %v237 = vld [vmem:[%s203 + $0x10] sm:$0xff]
        %v238 = vld [vmem:[%s203 + $0x18] sm:$0xff]
        %v239 = vld [vmem:[%s203 + $0x20] sm:$0xff]
        %v240 = vld [vmem:[%s203 + $0x28] sm:$0xff]
        %v241 = vld [vmem:[%s203 + $0x30] sm:$0xff]
        %v242 = vld [vmem:[%s203 + $0x38] sm:$0xff]
        %v243 = vld [vmem:[%s203 + $0x40] sm:$0xff]
        %v244 = vld [vmem:[%s203 + $0x48] sm:$0xff]
        %v245 = vld [vmem:[%s203 + $0x50] sm:$0xff]
        %v246 = vld [vmem:[%s203 + $0x58] sm:$0xff]
        %v247 = vld [vmem:[%s203 + $0x60] sm:$0xff]
        %v248 = vld [vmem:[%s203 + $0x68] sm:$0xff]
        %v249 = vld [vmem:[%s203 + $0x70] sm:$0xff]
        %v250 = vld [vmem:[%s203 + $0x78] sm:$0xff]
        %v251 = vld [vmem:[%s203 + $0x80] sm:$0xff]
        %v252 = vld [vmem:[%s203 + $0x88] sm:$0xff]
        %v253 = vld [vmem:[%s203 + $0x90] sm:$0xff]
        %v254 = vld [vmem:[%s203 + $0x98] sm:$0xff]
        %v255 = vld [vmem:[%s203 + $0xa0] sm:$0xff]
        %v256 = vld [vmem:[%s203 + $0xa8] sm:$0xff]
        %v257 = vld [vmem:[%s203 + $0xb0] sm:$0xff]
        %v258 = vld [vmem:[%s203 + $0xb8] sm:$0xff]
        %v259 = vld [vmem:[%s203 + $0xc0] sm:$0xff]
        %v260 = vld [vmem:[%s203 + $0xc8] sm:$0xff]
        %v261 = vld [vmem:[%s203 + $0xd0] sm:$0xff]
        %v262 = vld [vmem:[%s203 + $0xd8] sm:$0xff]
        %v263 = vld [vmem:[%s203 + $0xe0] sm:$0xff]
        %v264 = vld [vmem:[%s203 + $0xe8] sm:$0xff]
        %v265 = vld [vmem:[%s203 + $0xf0] sm:$0xff]
        %v266 = vld [vmem:[%s203 + $0xf8] sm:$0xff]
        %v267 = vld [vmem:[%s203 + $0x100] sm:$0xff]
        %v268 = vld [vmem:[%s203 + $0x108] sm:$0xff]
        %v269 = vld [vmem:[%s203 + $0x110] sm:$0xff]
        %v270 = vld [vmem:[%s203 + $0x118] sm:$0xff]
        %v271 = vld [vmem:[%s203 + $0x120] sm:$0xff]
        %v272 = vld [vmem:[%s203 + $0x128] sm:$0xff]
        %v273 = vld [vmem:[%s203 + $0x130] sm:$0xff]
        %v274 = vld [vmem:[%s203 + $0x138] sm:$0xff]
        %v275 = vld [vmem:[%s203 + $0x140] sm:$0xff]
        %v276 = vld [vmem:[%s203 + $0x148] sm:$0xff]
        %v277 = vld [vmem:[%s203 + $0x150] sm:$0xff]
        %v278 = vld [vmem:[%s203 + $0x158] sm:$0xff]
        %v279 = vld [vmem:[%s203 + $0x160] sm:$0xff]
        %v280 = vld [vmem:[%s203 + $0x168] sm:$0xff]
        %v281 = vld [vmem:[%s203 + $0x170] sm:$0xff]
        %v282 = vld [vmem:[%s203 + $0x178] sm:$0xff]
        %v283 = vld [vmem:[%s203 + $0x180] sm:$0xff]
        %v284 = vld [vmem:[%s203 + $0x188] sm:$0xff]
        %v285 = vld [vmem:[%s203 + $0x190] sm:$0xff]
        %v286 = vld [vmem:[%s203 + $0x198] sm:$0xff]
        %v287 = vld [vmem:[%s203 + $0x1a0] sm:$0xff]
        %v288 = vld [vmem:[%s203 + $0x1a8] sm:$0xff]
        %v289 = vld [vmem:[%s203 + $0x1b0] sm:$0xff]
        %v290 = vld [vmem:[%s203 + $0x1b8] sm:$0xff]
        %v291 = vld [vmem:[%s203 + $0x1c0] sm:$0xff]
        %v292 = vld [vmem:[%s203 + $0x1c8] sm:$0xff]
        %v293 = vld [vmem:[%s203 + $0x1d0] sm:$0xff]
        %v294 = vld [vmem:[%s203 + $0x1d8] sm:$0xff]
        %v295 = vld [vmem:[%s203 + $0x1e0] sm:$0xff]
        %v296 = vld [vmem:[%s203 + $0x1e8] sm:$0xff]
        %v297 = vld [vmem:[%s203 + $0x1f0] sm:$0xff]
        %v298 = vld [vmem:[%s203 + $0x1f8] sm:$0xff]
        %v299 = vld [vmem:[%s203 + $0x200] sm:$0xff]
        %v300 = vld [vmem:[%s203 + $0x208] sm:$0xff]
        %v301 = vld [vmem:[%s203 + $0x210] sm:$0xff]
        %v302 = vld [vmem:[%s203 + $0x218] sm:$0xff]
        %v303 = vld [vmem:[%s203 + $0x220] sm:$0xff]
        %v304 = vld [vmem:[%s203 + $0x228] sm:$0xff]
        %v305 = vld [vmem:[%s203 + $0x230] sm:$0xff]
        %v306 = vld [vmem:[%s203 + $0x238] sm:$0xff]
        %v307 = vld [vmem:[%s203 + $0x240] sm:$0xff]
        %v308 = vld [vmem:[%s203 + $0x248] sm:$0xff]
        %v309 = vld [vmem:[%s203 + $0x250] sm:$0xff]
        %v310 = vld [vmem:[%s203 + $0x258] sm:$0xff]
        %v311 = vld [vmem:[%s203 + $0x260] sm:$0xff]
        %v312 = vld [vmem:[%s203 + $0x268] sm:$0xff]
        %v313 = vld [vmem:[%s203 + $0x270] sm:$0xff]
        %v314 = vld [vmem:[%s203 + $0x278] sm:$0xff]
        %v315 = vld [vmem:[%s203 + $0x280] sm:$0xff]
        %v316 = vld [vmem:[%s203 + $0x288] sm:$0xff]
        %v317 = vld [vmem:[%s203 + $0x290] sm:$0xff]
        %v318 = vld [vmem:[%s203 + $0x298] sm:$0xff]
        %v319 = vld [vmem:[%s203 + $0x2a0] sm:$0xff]
        %v320 = vld [vmem:[%s203 + $0x2a8] sm:$0xff]
        %v321 = vld [vmem:[%s203 + $0x2b0] sm:$0xff]
        %v322 = vld [vmem:[%s203 + $0x2b8] sm:$0xff]
        %v323 = vld [vmem:[%s203 + $0x2c0] sm:$0xff]
        %v324 = vld [vmem:[%s203 + $0x2c8] sm:$0xff]
        %v325 = vld [vmem:[%s203 + $0x2d0] sm:$0xff]
        %v326 = vld [vmem:[%s203 + $0x2d8] sm:$0xff]
        %v327 = vld [vmem:[%s203 + $0x2e0] sm:$0xff]
        %v328 = vld [vmem:[%s203 + $0x2e8] sm:$0xff]
        %v329 = vld [vmem:[%s203 + $0x2f0] sm:$0xff]
        %v330 = vld [vmem:[%s203 + $0x2f8] sm:$0xff]
        %v331 = vld [vmem:[%s203 + $0x300] sm:$0xff]
        %v332 = vld [vmem:[%s203 + $0x308] sm:$0xff]
        %v333 = vld [vmem:[%s203 + $0x310] sm:$0xff]
        %v334 = vld [vmem:[%s203 + $0x318] sm:$0xff]
        %v335 = vld [vmem:[%s203 + $0x320] sm:$0xff]
        %v336 = vld [vmem:[%s203 + $0x328] sm:$0xff]
        %v337 = vld [vmem:[%s203 + $0x330] sm:$0xff]
        %v338 = vld [vmem:[%s203 + $0x338] sm:$0xff]
        %v339 = vld [vmem:[%s203 + $0x340] sm:$0xff]
        %v340 = vld [vmem:[%s203 + $0x348] sm:$0xff]
        %v341 = vld [vmem:[%s203 + $0x350] sm:$0xff]
        %v342 = vld [vmem:[%s203 + $0x358] sm:$0xff]
        %v343 = vld [vmem:[%s203 + $0x360] sm:$0xff]
        %v344 = vld [vmem:[%s203 + $0x368] sm:$0xff]
        %v345 = vld [vmem:[%s203 + $0x370] sm:$0xff]
        %v346 = vld [vmem:[%s203 + $0x378] sm:$0xff]
        %v347 = vld [vmem:[%s203 + $0x380] sm:$0xff]
        %v348 = vld [vmem:[%s203 + $0x388] sm:$0xff]
        %v349 = vld [vmem:[%s203 + $0x390] sm:$0xff]
        %v350 = vld [vmem:[%s203 + $0x398] sm:$0xff]
        %v351 = vld [vmem:[%s203 + $0x3a0] sm:$0xff]
        %v352 = vld [vmem:[%s203 + $0x3a8] sm:$0xff]
        %v353 = vld [vmem:[%s203 + $0x3b0] sm:$0xff]
        %v354 = vld [vmem:[%s203 + $0x3b8] sm:$0xff]
        %v355 = vld [vmem:[%s203 + $0x3c0] sm:$0xff]
        %v356 = vld [vmem:[%s203 + $0x3c8] sm:$0xff]
        %v357 = vld [vmem:[%s203 + $0x3d0] sm:$0xff]
        %v358 = vld [vmem:[%s203 + $0x3d8] sm:$0xff]
        %v359 = vld [vmem:[%s203 + $0x3e0] sm:$0xff]
        %v360 = vld [vmem:[%s203 + $0x3e8] sm:$0xff]
        %v361 = vld [vmem:[%s203 + $0x3f0] sm:$0xff]
        %v362 = vld [vmem:[%s203 + $0x3f8] sm:$0xff]
        %v363 = vpack.c.bf16 %v237, %v235
        %v364 = vpack.c.bf16 %v238, %v236
        %v365 = vpack.c.bf16 %v241, %v239
        %v366 = vpack.c.bf16 %v242, %v240
        %v367 = vpack.c.bf16 %v245, %v243
        %v368 = vpack.c.bf16 %v246, %v244
        %v369 = vpack.c.bf16 %v249, %v247
        %v370 = vpack.c.bf16 %v250, %v248
        %v371 = vpack.c.bf16 %v253, %v251
        %v372 = vpack.c.bf16 %v254, %v252
        %v373 = vpack.c.bf16 %v257, %v255
        %v374 = vpack.c.bf16 %v258, %v256
        %v375 = vpack.c.bf16 %v261, %v259
        %v376 = vpack.c.bf16 %v262, %v260
        %v377 = vpack.c.bf16 %v265, %v263
        %v378 = vpack.c.bf16 %v266, %v264
        %v379 = vpack.c.bf16 %v269, %v267
        %v380 = vpack.c.bf16 %v270, %v268
        %v381 = vpack.c.bf16 %v273, %v271
        %v382 = vpack.c.bf16 %v274, %v272
        %v383 = vpack.c.bf16 %v277, %v275
        %v384 = vpack.c.bf16 %v278, %v276
        %v385 = vpack.c.bf16 %v281, %v279
        %v386 = vpack.c.bf16 %v282, %v280
        %v387 = vpack.c.bf16 %v285, %v283
        %v388 = vpack.c.bf16 %v286, %v284
        %v389 = vpack.c.bf16 %v289, %v287
        %v390 = vpack.c.bf16 %v290, %v288
        %v391 = vpack.c.bf16 %v293, %v291
        %v392 = vpack.c.bf16 %v294, %v292
        %v393 = vpack.c.bf16 %v297, %v295
        %v394 = vpack.c.bf16 %v298, %v296
        %v395 = vpack.c.bf16 %v301, %v299
        %v396 = vpack.c.bf16 %v302, %v300
        %v397 = vpack.c.bf16 %v305, %v303
        %v398 = vpack.c.bf16 %v306, %v304
        %v399 = vpack.c.bf16 %v309, %v307
        %v400 = vpack.c.bf16 %v310, %v308
        %v401 = vpack.c.bf16 %v313, %v311
        %v402 = vpack.c.bf16 %v314, %v312
        %v403 = vpack.c.bf16 %v317, %v315
        %v404 = vpack.c.bf16 %v318, %v316
        %v405 = vpack.c.bf16 %v321, %v319
        %v406 = vpack.c.bf16 %v322, %v320
        %v407 = vpack.c.bf16 %v325, %v323
        %v408 = vpack.c.bf16 %v326, %v324
        %v409 = vpack.c.bf16 %v329, %v327
        %v410 = vpack.c.bf16 %v330, %v328
        %v411 = vpack.c.bf16 %v333, %v331
        %v412 = vpack.c.bf16 %v334, %v332
        %v413 = vpack.c.bf16 %v337, %v335
        %v414 = vpack.c.bf16 %v338, %v336
        %v415 = vpack.c.bf16 %v341, %v339
        %v416 = vpack.c.bf16 %v342, %v340
        %v417 = vpack.c.bf16 %v345, %v343
        %v418 = vpack.c.bf16 %v346, %v344
        %v419 = vpack.c.bf16 %v349, %v347
        %v420 = vpack.c.bf16 %v350, %v348
        %v421 = vpack.c.bf16 %v353, %v351
        %v422 = vpack.c.bf16 %v354, %v352
        %v423 = vpack.c.bf16 %v357, %v355
        %v424 = vpack.c.bf16 %v358, %v356
        %v425 = vpack.c.bf16 %v361, %v359
        %v426 = vpack.c.bf16 %v362, %v360
        %v427 = vld [vmem:[#allocation5] sm:$0xff]
        %v428 = vld [vmem:[#allocation5 + $0x8] sm:$0xff]
        %v429 = vld [vmem:[#allocation5 + $0x10] sm:$0xff]
        %v430 = vld [vmem:[#allocation5 + $0x18] sm:$0xff]
        %v431 = vld [vmem:[#allocation5 + $0x20] sm:$0xff]
        %v432 = vld [vmem:[#allocation5 + $0x28] sm:$0xff]
        %v433 = vld [vmem:[#allocation5 + $0x30] sm:$0xff]
        %v434 = vld [vmem:[#allocation5 + $0x38] sm:$0xff]
        %v435 = vld [vmem:[%s2] sm:$0x1]
        %v437 = vlaneseq
        %v438 = vshrl.u32 %v437, 7
        %v439 = vsub.s32 0, %v438
        %v440 = vrot.slane %v435, %v439
        %v450 = vunpack.c.l.b16 %v427
        %v451 = vunpack.c.h.b16 %v427
        %v452 = vunpack.c.l.b16 %v428
        %v453 = vunpack.c.h.b16 %v428
        %v454 = vunpack.c.l.b16 %v429
        %v455 = vunpack.c.h.b16 %v429
        %v456 = vunpack.c.l.b16 %v430
        %v457 = vunpack.c.h.b16 %v430
        %v458 = vunpack.c.l.b16 %v431
        %v459 = vunpack.c.h.b16 %v431
        %v460 = vunpack.c.l.b16 %v432
        %v461 = vunpack.c.h.b16 %v432
        %v462 = vunpack.c.l.b16 %v433
        %v463 = vunpack.c.h.b16 %v433
        %v464 = vunpack.c.l.b16 %v434
        %v465 = vunpack.c.h.b16 %v434
        %v466 = vpack.c.b16 %v452, %v450
        %v467 = vpack.c.b16 %v453, %v451
        %v468 = vpack.c.b16 %v456, %v454
        %v469 = vpack.c.b16 %v457, %v455
        %v470 = vpack.c.b16 %v460, %v458
        %v471 = vpack.c.b16 %v461, %v459
        %v472 = vpack.c.b16 %v464, %v462
        %v473 = vpack.c.b16 %v465, %v463
        %482 = vmatprep.subr.bf16.mxu0 %v467
        %483 = vmatpush1.bf16.xpose.msra.mxu0 %v466
        %484 = vmatprep.subr.bf16.mxu0 %v469
        %485 = vmatpush1.bf16.xpose.msra.mxu0 %v468
        %486 = vmatprep.subr.bf16.mxu0 %v471
        %487 = vmatpush1.bf16.xpose.msra.mxu0 %v470
        %488 = vmatprep.subr.bf16.mxu0 %v473
        %489 = vmatpush1.bf16.xpose.msra.mxu0 %v472
        %490 = vmatprep.subr.bf16.mxu0 0
        %491 = vmatpush1.bf16.xpose.msra.mxu0 0
        %492 = vmatprep.subr.bf16.mxu0 0
        %493 = vmatpush1.bf16.xpose.msra.mxu0 0
        %494 = vmatprep.subr.bf16.mxu0 0
        %495 = vmatpush1.bf16.xpose.msra.mxu0 0
        %496 = vmatprep.subr.bf16.mxu0 0
        %497 = vmatpush1.bf16.xpose.msra.mxu0 0
        %498 = vmatprep.subr.bf16.mxu0 0
        %499 = vmatpush1.bf16.xpose.msra.mxu0 0
        %500 = vmatprep.subr.bf16.mxu0 0
        %501 = vmatpush1.bf16.xpose.msra.mxu0 0
        %502 = vmatprep.subr.bf16.mxu0 0
        %503 = vmatpush1.bf16.xpose.msra.mxu0 0
        %504 = vmatprep.subr.bf16.mxu0 0
        %505 = vmatpush1.bf16.xpose.msra.mxu0 0
        %506 = vmatprep.subr.bf16.mxu0 0
        %507 = vmatpush1.bf16.xpose.msra.mxu0 0
        %508 = vmatprep.subr.bf16.mxu0 0
        %509 = vmatpush1.bf16.xpose.msra.mxu0 0
        %510 = vmatprep.subr.bf16.mxu0 0
        %511 = vmatpush1.bf16.xpose.msra.mxu0 0
        %512 = vmatprep.subr.bf16.mxu0 0
        %513 = vmatpush1.bf16.xpose.msra.mxu0 0
        %514 = vmatprep.mubr.bf16.mxu0 %v364
        %515 = vmatmul.mubr.bf16.gmra.mrb[0].mxu0 %v363
        %v516 = vpop.f32.mrb[0].mxu0
        %v517 = vadd.f32 %v440, %v516
        %v518 = vpop.f32.mrb[0].mxu0
        %v519 = vpop.f32.mrb[0].mxu0
        %v520 = vadd.f32 %v440, %v519
        %v521 = vpop.f32.mrb[0].mxu0
        %522 = vmatprep.mubr.bf16.mxu0 %v366
        %523 = vmatmul.mubr.bf16.gmra.mrb[0].mxu0 %v365
        %v524 = vpop.f32.mrb[0].mxu0
        %v525 = vadd.f32 %v440, %v524
        %v526 = vpop.f32.mrb[0].mxu0
        %v527 = vpop.f32.mrb[0].mxu0
        %v528 = vadd.f32 %v440, %v527
        %v529 = vpop.f32.mrb[0].mxu0
        %530 = vmatprep.mubr.bf16.mxu0 %v368
        %531 = vmatmul.mubr.bf16.gmra.mrb[0].mxu0 %v367
        %v532 = vpop.f32.mrb[0].mxu0
        %v533 = vadd.f32 %v440, %v532
        %v534 = vpop.f32.mrb[0].mxu0
        %v535 = vpop.f32.mrb[0].mxu0
        %v536 = vadd.f32 %v440, %v535
        %v537 = vpop.f32.mrb[0].mxu0
        %538 = vmatprep.mubr.bf16.mxu0 %v370
        %539 = vmatmul.mubr.bf16.gmra.mrb[0].mxu0 %v369
        %v540 = vpop.f32.mrb[0].mxu0
        %v541 = vadd.f32 %v440, %v540
        %v542 = vpop.f32.mrb[0].mxu0
        %v543 = vpop.f32.mrb[0].mxu0
        %v544 = vadd.f32 %v440, %v543
        %v545 = vpop.f32.mrb[0].mxu0
        %546 = vmatprep.mubr.bf16.mxu0 %v372
        %547 = vmatmul.mubr.bf16.gmra.mrb[0].mxu0 %v371
        %v548 = vpop.f32.mrb[0].mxu0
        %v549 = vadd.f32 %v440, %v548
        %v550 = vpop.f32.mrb[0].mxu0
        %v551 = vpop.f32.mrb[0].mxu0
        %v552 = vadd.f32 %v440, %v551
        %v553 = vpop.f32.mrb[0].mxu0
        %554 = vmatprep.mubr.bf16.mxu0 %v374
        %555 = vmatmul.mubr.bf16.gmra.mrb[0].mxu0 %v373
        %v556 = vpop.f32.mrb[0].mxu0
        %v557 = vadd.f32 %v440, %v556
        %v558 = vpop.f32.mrb[0].mxu0
        %v559 = vpop.f32.mrb[0].mxu0
        %v560 = vadd.f32 %v440, %v559
        %v561 = vpop.f32.mrb[0].mxu0
        %562 = vmatprep.mubr.bf16.mxu0 %v376
        %563 = vmatmul.mubr.bf16.gmra.mrb[0].mxu0 %v375
        %v564 = vpop.f32.mrb[0].mxu0
        %v565 = vadd.f32 %v440, %v564
        %v566 = vpop.f32.mrb[0].mxu0
        %v567 = vpop.f32.mrb[0].mxu0
        %v568 = vadd.f32 %v440, %v567
        %v569 = vpop.f32.mrb[0].mxu0
        %570 = vmatprep.mubr.bf16.mxu0 %v378
        %571 = vmatmul.mubr.bf16.gmra.mrb[0].mxu0 %v377
        %v572 = vpop.f32.mrb[0].mxu0
        %v573 = vadd.f32 %v440, %v572
        %v574 = vpop.f32.mrb[0].mxu0
        %v575 = vpop.f32.mrb[0].mxu0
        %v576 = vadd.f32 %v440, %v575
        %v577 = vpop.f32.mrb[0].mxu0
        %578 = vmatprep.mubr.bf16.mxu0 %v380
        %579 = vmatmul.mubr.bf16.gmra.mrb[0].mxu0 %v379
        %v580 = vpop.f32.mrb[0].mxu0
        %v581 = vadd.f32 %v440, %v580
        %v582 = vpop.f32.mrb[0].mxu0
        %v583 = vpop.f32.mrb[0].mxu0
        %v584 = vadd.f32 %v440, %v583
        %v585 = vpop.f32.mrb[0].mxu0
        %586 = vmatprep.mubr.bf16.mxu0 %v382
        %587 = vmatmul.mubr.bf16.gmra.mrb[0].mxu0 %v381
        %v588 = vpop.f32.mrb[0].mxu0
        %v589 = vadd.f32 %v440, %v588
        %v590 = vpop.f32.mrb[0].mxu0
        %v591 = vpop.f32.mrb[0].mxu0
        %v592 = vadd.f32 %v440, %v591
        %v593 = vpop.f32.mrb[0].mxu0
        %594 = vmatprep.mubr.bf16.mxu0 %v384
        %595 = vmatmul.mubr.bf16.gmra.mrb[0].mxu0 %v383
        %v596 = vpop.f32.mrb[0].mxu0
        %v597 = vadd.f32 %v440, %v596
        %v598 = vpop.f32.mrb[0].mxu0
        %v599 = vpop.f32.mrb[0].mxu0
        %v600 = vadd.f32 %v440, %v599
        %v601 = vpop.f32.mrb[0].mxu0
        %602 = vmatprep.mubr.bf16.mxu0 %v386
        %603 = vmatmul.mubr.bf16.gmra.mrb[0].mxu0 %v385
        %v604 = vpop.f32.mrb[0].mxu0
        %v605 = vadd.f32 %v440, %v604
        %v606 = vpop.f32.mrb[0].mxu0
        %v607 = vpop.f32.mrb[0].mxu0
        %v608 = vadd.f32 %v440, %v607
        %v609 = vpop.f32.mrb[0].mxu0
        %610 = vmatprep.mubr.bf16.mxu0 %v388
        %611 = vmatmul.mubr.bf16.gmra.mrb[0].mxu0 %v387
        %v612 = vpop.f32.mrb[0].mxu0
        %v613 = vadd.f32 %v440, %v612
        %v614 = vpop.f32.mrb[0].mxu0
        %v615 = vpop.f32.mrb[0].mxu0
        %v616 = vadd.f32 %v440, %v615
        %v617 = vpop.f32.mrb[0].mxu0
        %618 = vmatprep.mubr.bf16.mxu0 %v390
        %619 = vmatmul.mubr.bf16.gmra.mrb[0].mxu0 %v389
        %v620 = vpop.f32.mrb[0].mxu0
        %v621 = vadd.f32 %v440, %v620
        %v622 = vpop.f32.mrb[0].mxu0
        %v623 = vpop.f32.mrb[0].mxu0
        %v624 = vadd.f32 %v440, %v623
        %v625 = vpop.f32.mrb[0].mxu0
        %626 = vmatprep.mubr.bf16.mxu0 %v392
        %627 = vmatmul.mubr.bf16.gmra.mrb[0].mxu0 %v391
        %v628 = vpop.f32.mrb[0].mxu0
        %v629 = vadd.f32 %v440, %v628
        %v630 = vpop.f32.mrb[0].mxu0
        %v631 = vpop.f32.mrb[0].mxu0
        %v632 = vadd.f32 %v440, %v631
        %v633 = vpop.f32.mrb[0].mxu0
        %634 = vmatprep.mubr.bf16.mxu0 %v394
        %635 = vmatmul.mubr.bf16.gmra.mrb[0].mxu0 %v393
        %v636 = vpop.f32.mrb[0].mxu0
        %v637 = vadd.f32 %v440, %v636
        %v638 = vpop.f32.mrb[0].mxu0
        %v639 = vpop.f32.mrb[0].mxu0
        %v640 = vadd.f32 %v440, %v639
        %v641 = vpop.f32.mrb[0].mxu0
        %642 = vmatprep.mubr.bf16.mxu0 %v396
        %643 = vmatmul.mubr.bf16.gmra.mrb[0].mxu0 %v395
        %v644 = vpop.f32.mrb[0].mxu0
        %v645 = vadd.f32 %v440, %v644
        %v646 = vpop.f32.mrb[0].mxu0
        %v647 = vpop.f32.mrb[0].mxu0
        %v648 = vadd.f32 %v440, %v647
        %v649 = vpop.f32.mrb[0].mxu0
        %650 = vmatprep.mubr.bf16.mxu0 %v398
        %651 = vmatmul.mubr.bf16.gmra.mrb[0].mxu0 %v397
        %v652 = vpop.f32.mrb[0].mxu0
        %v653 = vadd.f32 %v440, %v652
        %v654 = vpop.f32.mrb[0].mxu0
        %v655 = vpop.f32.mrb[0].mxu0
        %v656 = vadd.f32 %v440, %v655
        %v657 = vpop.f32.mrb[0].mxu0
        %658 = vmatprep.mubr.bf16.mxu0 %v400
        %659 = vmatmul.mubr.bf16.gmra.mrb[0].mxu0 %v399
        %v660 = vpop.f32.mrb[0].mxu0
        %v661 = vadd.f32 %v440, %v660
        %v662 = vpop.f32.mrb[0].mxu0
        %v663 = vpop.f32.mrb[0].mxu0
        %v664 = vadd.f32 %v440, %v663
        %v665 = vpop.f32.mrb[0].mxu0
        %666 = vmatprep.mubr.bf16.mxu0 %v402
        %667 = vmatmul.mubr.bf16.gmra.mrb[0].mxu0 %v401
        %v668 = vpop.f32.mrb[0].mxu0
        %v669 = vadd.f32 %v440, %v668
        %v670 = vpop.f32.mrb[0].mxu0
        %v671 = vpop.f32.mrb[0].mxu0
        %v672 = vadd.f32 %v440, %v671
        %v673 = vpop.f32.mrb[0].mxu0
        %674 = vmatprep.mubr.bf16.mxu0 %v404
        %675 = vmatmul.mubr.bf16.gmra.mrb[0].mxu0 %v403
        %v676 = vpop.f32.mrb[0].mxu0
        %v677 = vadd.f32 %v440, %v676
        %v678 = vpop.f32.mrb[0].mxu0
        %v679 = vpop.f32.mrb[0].mxu0
        %v680 = vadd.f32 %v440, %v679
        %v681 = vpop.f32.mrb[0].mxu0
        %682 = vmatprep.mubr.bf16.mxu0 %v406
        %683 = vmatmul.mubr.bf16.gmra.mrb[0].mxu0 %v405
        %v684 = vpop.f32.mrb[0].mxu0
        %v685 = vadd.f32 %v440, %v684
        %v686 = vpop.f32.mrb[0].mxu0
        %v687 = vpop.f32.mrb[0].mxu0
        %v688 = vadd.f32 %v440, %v687
        %v689 = vpop.f32.mrb[0].mxu0
        %690 = vmatprep.mubr.bf16.mxu0 %v408
        %691 = vmatmul.mubr.bf16.gmra.mrb[0].mxu0 %v407
        %v692 = vpop.f32.mrb[0].mxu0
        %v693 = vadd.f32 %v440, %v692
        %v694 = vpop.f32.mrb[0].mxu0
        %v695 = vpop.f32.mrb[0].mxu0
        %v696 = vadd.f32 %v440, %v695
        %v697 = vpop.f32.mrb[0].mxu0
        %698 = vmatprep.mubr.bf16.mxu0 %v410
        %699 = vmatmul.mubr.bf16.gmra.mrb[0].mxu0 %v409
        %v700 = vpop.f32.mrb[0].mxu0
        %v701 = vadd.f32 %v440, %v700
        %v702 = vpop.f32.mrb[0].mxu0
        %v703 = vpop.f32.mrb[0].mxu0
        %v704 = vadd.f32 %v440, %v703
        %v705 = vpop.f32.mrb[0].mxu0
        %706 = vmatprep.mubr.bf16.mxu0 %v412
        %707 = vmatmul.mubr.bf16.gmra.mrb[0].mxu0 %v411
        %v708 = vpop.f32.mrb[0].mxu0
        %v709 = vadd.f32 %v440, %v708
        %v710 = vpop.f32.mrb[0].mxu0
        %v711 = vpop.f32.mrb[0].mxu0
        %v712 = vadd.f32 %v440, %v711
        %v713 = vpop.f32.mrb[0].mxu0
        %714 = vmatprep.mubr.bf16.mxu0 %v414
        %715 = vmatmul.mubr.bf16.gmra.mrb[0].mxu0 %v413
        %v716 = vpop.f32.mrb[0].mxu0
        %v717 = vadd.f32 %v440, %v716
        %v718 = vpop.f32.mrb[0].mxu0
        %v719 = vpop.f32.mrb[0].mxu0
        %v720 = vadd.f32 %v440, %v719
        %v721 = vpop.f32.mrb[0].mxu0
        %722 = vmatprep.mubr.bf16.mxu0 %v416
        %723 = vmatmul.mubr.bf16.gmra.mrb[0].mxu0 %v415
        %v724 = vpop.f32.mrb[0].mxu0
        %v725 = vadd.f32 %v440, %v724
        %v726 = vpop.f32.mrb[0].mxu0
        %v727 = vpop.f32.mrb[0].mxu0
        %v728 = vadd.f32 %v440, %v727
        %v729 = vpop.f32.mrb[0].mxu0
        %730 = vmatprep.mubr.bf16.mxu0 %v418
        %731 = vmatmul.mubr.bf16.gmra.mrb[0].mxu0 %v417
        %v732 = vpop.f32.mrb[0].mxu0
        %v733 = vadd.f32 %v440, %v732
        %v734 = vpop.f32.mrb[0].mxu0
        %v735 = vpop.f32.mrb[0].mxu0
        %v736 = vadd.f32 %v440, %v735
        %v737 = vpop.f32.mrb[0].mxu0
        %738 = vmatprep.mubr.bf16.mxu0 %v420
        %739 = vmatmul.mubr.bf16.gmra.mrb[0].mxu0 %v419
        %v740 = vpop.f32.mrb[0].mxu0
        %v741 = vadd.f32 %v440, %v740
        %v742 = vpop.f32.mrb[0].mxu0
        %v743 = vpop.f32.mrb[0].mxu0
        %v744 = vadd.f32 %v440, %v743
        %v745 = vpop.f32.mrb[0].mxu0
        %746 = vmatprep.mubr.bf16.mxu0 %v422
        %747 = vmatmul.mubr.bf16.gmra.mrb[0].mxu0 %v421
        %v748 = vpop.f32.mrb[0].mxu0
        %v749 = vadd.f32 %v440, %v748
        %v750 = vpop.f32.mrb[0].mxu0
        %v751 = vpop.f32.mrb[0].mxu0
        %v752 = vadd.f32 %v440, %v751
        %v753 = vpop.f32.mrb[0].mxu0
        %754 = vmatprep.mubr.bf16.mxu0 %v424
        %755 = vmatmul.mubr.bf16.gmra.mrb[0].mxu0 %v423
        %v756 = vpop.f32.mrb[0].mxu0
        %v757 = vadd.f32 %v440, %v756
        %v758 = vpop.f32.mrb[0].mxu0
        %v759 = vpop.f32.mrb[0].mxu0
        %v760 = vadd.f32 %v440, %v759
        %v761 = vpop.f32.mrb[0].mxu0
        %762 = vmatprep.mubr.bf16.mxu0 %v426
        %763 = vmatmul.mubr.bf16.gmra.mrb[0].mxu0 %v425
        %v764 = vpop.f32.mrb[0].mxu0
        %v765 = vadd.f32 %v440, %v764
        %v766 = vpop.f32.mrb[0].mxu0
        %v767 = vpop.f32.mrb[0].mxu0
        %v768 = vadd.f32 %v440, %v767
        %v769 = vpop.f32.mrb[0].mxu0
        %770 = vdwg.mxu0
        %v771 = vmax.f32 %v517, 0.0
        %v772 = vmax.f32 %v520, 0.0
        %v773 = vmax.f32 %v525, 0.0
        %v774 = vmax.f32 %v528, 0.0
        %v775 = vmax.f32 %v533, 0.0
        %v776 = vmax.f32 %v536, 0.0
        %v777 = vmax.f32 %v541, 0.0
        %v778 = vmax.f32 %v544, 0.0
        %v779 = vmax.f32 %v549, 0.0
        %v780 = vmax.f32 %v552, 0.0
        %v781 = vmax.f32 %v557, 0.0
        %v782 = vmax.f32 %v560, 0.0
        %v783 = vmax.f32 %v565, 0.0
        %v784 = vmax.f32 %v568, 0.0
        %v785 = vmax.f32 %v573, 0.0
        %v786 = vmax.f32 %v576, 0.0
        %v787 = vmax.f32 %v581, 0.0
        %v788 = vmax.f32 %v584, 0.0
        %v789 = vmax.f32 %v589, 0.0
        %v790 = vmax.f32 %v592, 0.0
        %v791 = vmax.f32 %v597, 0.0
        %v792 = vmax.f32 %v600, 0.0
        %v793 = vmax.f32 %v605, 0.0
        %v794 = vmax.f32 %v608, 0.0
        %v795 = vmax.f32 %v613, 0.0
        %v796 = vmax.f32 %v616, 0.0
        %v797 = vmax.f32 %v621, 0.0
        %v798 = vmax.f32 %v624, 0.0
        %v799 = vmax.f32 %v629, 0.0
        %v800 = vmax.f32 %v632, 0.0
        %v801 = vmax.f32 %v637, 0.0
        %v802 = vmax.f32 %v640, 0.0
        %v803 = vmax.f32 %v645, 0.0
        %v804 = vmax.f32 %v648, 0.0
        %v805 = vmax.f32 %v653, 0.0
        %v806 = vmax.f32 %v656, 0.0
        %v807 = vmax.f32 %v661, 0.0
        %v808 = vmax.f32 %v664, 0.0
        %v809 = vmax.f32 %v669, 0.0
        %v810 = vmax.f32 %v672, 0.0
        %v811 = vmax.f32 %v677, 0.0
        %v812 = vmax.f32 %v680, 0.0
        %v813 = vmax.f32 %v685, 0.0
        %v814 = vmax.f32 %v688, 0.0
        %v815 = vmax.f32 %v693, 0.0
        %v816 = vmax.f32 %v696, 0.0
        %v817 = vmax.f32 %v701, 0.0
        %v818 = vmax.f32 %v704, 0.0
        %v819 = vmax.f32 %v709, 0.0
        %v820 = vmax.f32 %v712, 0.0
        %v821 = vmax.f32 %v717, 0.0
        %v822 = vmax.f32 %v720, 0.0
        %v823 = vmax.f32 %v725, 0.0
        %v824 = vmax.f32 %v728, 0.0
        %v825 = vmax.f32 %v733, 0.0
        %v826 = vmax.f32 %v736, 0.0
        %v827 = vmax.f32 %v741, 0.0
        %v828 = vmax.f32 %v744, 0.0
        %v829 = vmax.f32 %v749, 0.0
        %v830 = vmax.f32 %v752, 0.0
        %v831 = vmax.f32 %v757, 0.0
        %v832 = vmax.f32 %v760, 0.0
        %v833 = vmax.f32 %v765, 0.0
        %v834 = vmax.f32 %v768, 0.0
        %v835 = vpack.c.bf16 %v772, %v771
        %v836 = vpack.c.bf16 %v774, %v773
        %v837 = vpack.c.bf16 %v776, %v775
        %v838 = vpack.c.bf16 %v778, %v777
        %v839 = vpack.c.bf16 %v780, %v779
        %v840 = vpack.c.bf16 %v782, %v781
        %v841 = vpack.c.bf16 %v784, %v783
        %v842 = vpack.c.bf16 %v786, %v785
        %v843 = vpack.c.bf16 %v788, %v787
        %v844 = vpack.c.bf16 %v790, %v789
        %v845 = vpack.c.bf16 %v792, %v791
        %v846 = vpack.c.bf16 %v794, %v793
        %v847 = vpack.c.bf16 %v796, %v795
        %v848 = vpack.c.bf16 %v798, %v797
        %v849 = vpack.c.bf16 %v800, %v799
        %v850 = vpack.c.bf16 %v802, %v801
        %v851 = vpack.c.bf16 %v804, %v803
        %v852 = vpack.c.bf16 %v806, %v805
        %v853 = vpack.c.bf16 %v808, %v807
        %v854 = vpack.c.bf16 %v810, %v809
        %v855 = vpack.c.bf16 %v812, %v811
        %v856 = vpack.c.bf16 %v814, %v813
        %v857 = vpack.c.bf16 %v816, %v815
        %v858 = vpack.c.bf16 %v818, %v817
        %v859 = vpack.c.bf16 %v820, %v819
        %v860 = vpack.c.bf16 %v822, %v821
        %v861 = vpack.c.bf16 %v824, %v823
        %v862 = vpack.c.bf16 %v826, %v825
        %v863 = vpack.c.bf16 %v828, %v827
        %v864 = vpack.c.bf16 %v830, %v829
        %v865 = vpack.c.bf16 %v832, %v831
        %v866 = vpack.c.bf16 %v834, %v833
        %v867 = vld [vmem:[%s3] sm:$0x3]
        %v869 = vlaneseq
        %v870 = vshrl.u32 %v869, 7
        %v871 = vsub.s32 0, %v870
        %v872 = vrot.slane %v867, %v871
        %v873 = vlaneseq
        %v874 = vshrl.u32 %v873, 7
        %v875 = vsub.s32 1, %v874
        %v876 = vrot.slane %v867, %v875
        %vm879 = vcmask 523264
        %v881 = vsel %vm879, %v835, 0
        %v884 = vsel %vm879, %v836, 0
        %v887 = vsel %vm879, %v837, 0
        %v890 = vsel %vm879, %v838, 0
        %v893 = vsel %vm879, %v839, 0
        %v896 = vsel %vm879, %v840, 0
        %v899 = vsel %vm879, %v841, 0
        %v902 = vsel %vm879, %v842, 0
        %v905 = vsel %vm879, %v843, 0
        %v908 = vsel %vm879, %v844, 0
        %v911 = vsel %vm879, %v845, 0
        %v914 = vsel %vm879, %v846, 0
        %v917 = vsel %vm879, %v847, 0
        %v920 = vsel %vm879, %v848, 0
        %v923 = vsel %vm879, %v849, 0
        %v926 = vsel %vm879, %v850, 0
        %v929 = vsel %vm879, %v851, 0
        %v932 = vsel %vm879, %v852, 0
        %v935 = vsel %vm879, %v853, 0
        %v938 = vsel %vm879, %v854, 0
        %v941 = vsel %vm879, %v855, 0
        %v944 = vsel %vm879, %v856, 0
        %v947 = vsel %vm879, %v857, 0
        %v950 = vsel %vm879, %v858, 0
        %v953 = vsel %vm879, %v859, 0
        %v956 = vsel %vm879, %v860, 0
        %v959 = vsel %vm879, %v861, 0
        %v962 = vsel %vm879, %v862, 0
        %v965 = vsel %vm879, %v863, 0
        %v968 = vsel %vm879, %v864, 0
        %v971 = vsel %vm879, %v865, 0
        %v974 = vsel %vm879, %v866, 0
        %976 = vmatprep.subr.bf16.mxu0 %v467
        %977 = vmatpush1.bf16.msra.mxu0 %v466
        %978 = vmatprep.subr.bf16.mxu0 %v469
        %979 = vmatpush1.bf16.msra.mxu0 %v468
        %980 = vmatprep.subr.bf16.mxu0 %v471
        %981 = vmatpush1.bf16.msra.mxu0 %v470
        %982 = vmatprep.subr.bf16.mxu0 %v473
        %983 = vmatpush1.bf16.msra.mxu0 %v472
        %984 = vmatprep.subr.bf16.mxu0 0
        %985 = vmatpush1.bf16.msra.mxu0 0
        %986 = vmatprep.subr.bf16.mxu0 0
        %987 = vmatpush1.bf16.msra.mxu0 0
        %988 = vmatprep.subr.bf16.mxu0 0
        %989 = vmatpush1.bf16.msra.mxu0 0
        %990 = vmatprep.subr.bf16.mxu0 0
        %991 = vmatpush1.bf16.msra.mxu0 0
        %992 = vmatprep.subr.bf16.mxu0 0
        %993 = vmatpush1.bf16.msra.mxu0 0
        %994 = vmatprep.subr.bf16.mxu0 0
        %995 = vmatpush1.bf16.msra.mxu0 0
        %996 = vmatprep.subr.bf16.mxu0 0
        %997 = vmatpush1.bf16.msra.mxu0 0
        %998 = vmatprep.subr.bf16.mxu0 0
        %999 = vmatpush1.bf16.msra.mxu0 0
        %1000 = vmatprep.subr.bf16.mxu0 0
        %1001 = vmatpush1.bf16.msra.mxu0 0
        %1002 = vmatprep.subr.bf16.mxu0 0
        %1003 = vmatpush1.bf16.msra.mxu0 0
        %1004 = vmatprep.subr.bf16.mxu0 0
        %1005 = vmatpush1.bf16.msra.mxu0 0
        %1006 = vmatprep.subr.bf16.mxu0 0
        %1007 = vmatpush1.bf16.msra.mxu0 0
        %1008 = vmatprep.mubr.bf16.mxu0 0
        %1009 = vmatmul.mubr.bf16.gmra.mrb[0].mxu0 %v881
        %v1010 = vpop.f32.mrb[0].mxu0
        %v1011 = vadd.f32 %v872, %v1010
        %v1012 = vpop.f32.mrb[0].mxu0
        %v1013 = vadd.f32 %v876, %v1012
        %v1014 = vpop.f32.mrb[0].mxu0
        %v1015 = vadd.f32 %v872, %v1014
        %v1016 = vpop.f32.mrb[0].mxu0
        %v1017 = vadd.f32 %v876, %v1016
        %1018 = vmatprep.mubr.bf16.mxu0 0
        %1019 = vmatmul.mubr.bf16.gmra.mrb[0].mxu0 %v884
        %v1020 = vpop.f32.mrb[0].mxu0
        %v1021 = vadd.f32 %v872, %v1020
        %v1022 = vpop.f32.mrb[0].mxu0
        %v1023 = vadd.f32 %v876, %v1022
        %v1024 = vpop.f32.mrb[0].mxu0
        %v1025 = vadd.f32 %v872, %v1024
        %v1026 = vpop.f32.mrb[0].mxu0
        %v1027 = vadd.f32 %v876, %v1026
        %1028 = vmatprep.mubr.bf16.mxu0 0
        %1029 = vmatmul.mubr.bf16.gmra.mrb[0].mxu0 %v887
        %v1030 = vpop.f32.mrb[0].mxu0
        %v1031 = vadd.f32 %v872, %v1030
        %v1032 = vpop.f32.mrb[0].mxu0
        %v1033 = vadd.f32 %v876, %v1032
        %v1034 = vpop.f32.mrb[0].mxu0
        %v1035 = vadd.f32 %v872, %v1034
        %v1036 = vpop.f32.mrb[0].mxu0
        %v1037 = vadd.f32 %v876, %v1036
        %1038 = vmatprep.mubr.bf16.mxu0 0
        %1039 = vmatmul.mubr.bf16.gmra.mrb[0].mxu0 %v890
        %v1040 = vpop.f32.mrb[0].mxu0
        %v1041 = vadd.f32 %v872, %v1040
        %v1042 = vpop.f32.mrb[0].mxu0
        %v1043 = vadd.f32 %v876, %v1042
        %v1044 = vpop.f32.mrb[0].mxu0
        %v1045 = vadd.f32 %v872, %v1044
        %v1046 = vpop.f32.mrb[0].mxu0
        %v1047 = vadd.f32 %v876, %v1046
        %1048 = vmatprep.mubr.bf16.mxu0 0
        %1049 = vmatmul.mubr.bf16.gmra.mrb[0].mxu0 %v893
        %v1050 = vpop.f32.mrb[0].mxu0
        %v1051 = vadd.f32 %v872, %v1050
        %v1052 = vpop.f32.mrb[0].mxu0
        %v1053 = vadd.f32 %v876, %v1052
        %v1054 = vpop.f32.mrb[0].mxu0
        %v1055 = vadd.f32 %v872, %v1054
        %v1056 = vpop.f32.mrb[0].mxu0
        %v1057 = vadd.f32 %v876, %v1056
        %1058 = vmatprep.mubr.bf16.mxu0 0
        %1059 = vmatmul.mubr.bf16.gmra.mrb[0].mxu0 %v896
        %v1060 = vpop.f32.mrb[0].mxu0
        %v1061 = vadd.f32 %v872, %v1060
        %v1062 = vpop.f32.mrb[0].mxu0
        %v1063 = vadd.f32 %v876, %v1062
        %v1064 = vpop.f32.mrb[0].mxu0
        %v1065 = vadd.f32 %v872, %v1064
        %v1066 = vpop.f32.mrb[0].mxu0
        %v1067 = vadd.f32 %v876, %v1066
        %1068 = vmatprep.mubr.bf16.mxu0 0
        %1069 = vmatmul.mubr.bf16.gmra.mrb[0].mxu0 %v899
        %v1070 = vpop.f32.mrb[0].mxu0
        %v1071 = vadd.f32 %v872, %v1070
        %v1072 = vpop.f32.mrb[0].mxu0
        %v1073 = vadd.f32 %v876, %v1072
        %v1074 = vpop.f32.mrb[0].mxu0
        %v1075 = vadd.f32 %v872, %v1074
        %v1076 = vpop.f32.mrb[0].mxu0
        %v1077 = vadd.f32 %v876, %v1076
        %1078 = vmatprep.mubr.bf16.mxu0 0
        %1079 = vmatmul.mubr.bf16.gmra.mrb[0].mxu0 %v902
        %v1080 = vpop.f32.mrb[0].mxu0
        %v1081 = vadd.f32 %v872, %v1080
        %v1082 = vpop.f32.mrb[0].mxu0
        %v1083 = vadd.f32 %v876, %v1082
        %v1084 = vpop.f32.mrb[0].mxu0
        %v1085 = vadd.f32 %v872, %v1084
        %v1086 = vpop.f32.mrb[0].mxu0
        %v1087 = vadd.f32 %v876, %v1086
        %1088 = vmatprep.mubr.bf16.mxu0 0
        %1089 = vmatmul.mubr.bf16.gmra.mrb[0].mxu0 %v905
        %v1090 = vpop.f32.mrb[0].mxu0
        %v1091 = vadd.f32 %v872, %v1090
        %v1092 = vpop.f32.mrb[0].mxu0
        %v1093 = vadd.f32 %v876, %v1092
        %v1094 = vpop.f32.mrb[0].mxu0
        %v1095 = vadd.f32 %v872, %v1094
        %v1096 = vpop.f32.mrb[0].mxu0
        %v1097 = vadd.f32 %v876, %v1096
        %1098 = vmatprep.mubr.bf16.mxu0 0
        %1099 = vmatmul.mubr.bf16.gmra.mrb[0].mxu0 %v908
        %v1100 = vpop.f32.mrb[0].mxu0
        %v1101 = vadd.f32 %v872, %v1100
        %v1102 = vpop.f32.mrb[0].mxu0
        %v1103 = vadd.f32 %v876, %v1102
        %v1104 = vpop.f32.mrb[0].mxu0
        %v1105 = vadd.f32 %v872, %v1104
        %v1106 = vpop.f32.mrb[0].mxu0
        %v1107 = vadd.f32 %v876, %v1106
        %1108 = vmatprep.mubr.bf16.mxu0 0
        %1109 = vmatmul.mubr.bf16.gmra.mrb[0].mxu0 %v911
        %v1110 = vpop.f32.mrb[0].mxu0
        %v1111 = vadd.f32 %v872, %v1110
        %v1112 = vpop.f32.mrb[0].mxu0
        %v1113 = vadd.f32 %v876, %v1112
        %v1114 = vpop.f32.mrb[0].mxu0
        %v1115 = vadd.f32 %v872, %v1114
        %v1116 = vpop.f32.mrb[0].mxu0
        %v1117 = vadd.f32 %v876, %v1116
        %1118 = vmatprep.mubr.bf16.mxu0 0
        %1119 = vmatmul.mubr.bf16.gmra.mrb[0].mxu0 %v914
        %v1120 = vpop.f32.mrb[0].mxu0
        %v1121 = vadd.f32 %v872, %v1120
        %v1122 = vpop.f32.mrb[0].mxu0
        %v1123 = vadd.f32 %v876, %v1122
        %v1124 = vpop.f32.mrb[0].mxu0
        %v1125 = vadd.f32 %v872, %v1124
        %v1126 = vpop.f32.mrb[0].mxu0
        %v1127 = vadd.f32 %v876, %v1126
        %1128 = vmatprep.mubr.bf16.mxu0 0
        %1129 = vmatmul.mubr.bf16.gmra.mrb[0].mxu0 %v917
        %v1130 = vpop.f32.mrb[0].mxu0
        %v1131 = vadd.f32 %v872, %v1130
        %v1132 = vpop.f32.mrb[0].mxu0
        %v1133 = vadd.f32 %v876, %v1132
        %v1134 = vpop.f32.mrb[0].mxu0
        %v1135 = vadd.f32 %v872, %v1134
        %v1136 = vpop.f32.mrb[0].mxu0
        %v1137 = vadd.f32 %v876, %v1136
        %1138 = vmatprep.mubr.bf16.mxu0 0
        %1139 = vmatmul.mubr.bf16.gmra.mrb[0].mxu0 %v920
        %v1140 = vpop.f32.mrb[0].mxu0
        %v1141 = vadd.f32 %v872, %v1140
        %v1142 = vpop.f32.mrb[0].mxu0
        %v1143 = vadd.f32 %v876, %v1142
        %v1144 = vpop.f32.mrb[0].mxu0
        %v1145 = vadd.f32 %v872, %v1144
        %v1146 = vpop.f32.mrb[0].mxu0
        %v1147 = vadd.f32 %v876, %v1146
        %1148 = vmatprep.mubr.bf16.mxu0 0
        %1149 = vmatmul.mubr.bf16.gmra.mrb[0].mxu0 %v923
        %v1150 = vpop.f32.mrb[0].mxu0
        %v1151 = vadd.f32 %v872, %v1150
        %v1152 = vpop.f32.mrb[0].mxu0
        %v1153 = vadd.f32 %v876, %v1152
        %v1154 = vpop.f32.mrb[0].mxu0
        %v1155 = vadd.f32 %v872, %v1154
        %v1156 = vpop.f32.mrb[0].mxu0
        %v1157 = vadd.f32 %v876, %v1156
        %1158 = vmatprep.mubr.bf16.mxu0 0
        %1159 = vmatmul.mubr.bf16.gmra.mrb[0].mxu0 %v926
        %v1160 = vpop.f32.mrb[0].mxu0
        %v1161 = vadd.f32 %v872, %v1160
        %v1162 = vpop.f32.mrb[0].mxu0
        %v1163 = vadd.f32 %v876, %v1162
        %v1164 = vpop.f32.mrb[0].mxu0
        %v1165 = vadd.f32 %v872, %v1164
        %v1166 = vpop.f32.mrb[0].mxu0
        %v1167 = vadd.f32 %v876, %v1166
        %1168 = vmatprep.mubr.bf16.mxu0 0
        %1169 = vmatmul.mubr.bf16.gmra.mrb[0].mxu0 %v929
        %v1170 = vpop.f32.mrb[0].mxu0
        %v1171 = vadd.f32 %v872, %v1170
        %v1172 = vpop.f32.mrb[0].mxu0
        %v1173 = vadd.f32 %v876, %v1172
        %v1174 = vpop.f32.mrb[0].mxu0
        %v1175 = vadd.f32 %v872, %v1174
        %v1176 = vpop.f32.mrb[0].mxu0
        %v1177 = vadd.f32 %v876, %v1176
        %1178 = vmatprep.mubr.bf16.mxu0 0
        %1179 = vmatmul.mubr.bf16.gmra.mrb[0].mxu0 %v932
        %v1180 = vpop.f32.mrb[0].mxu0
        %v1181 = vadd.f32 %v872, %v1180
        %v1182 = vpop.f32.mrb[0].mxu0
        %v1183 = vadd.f32 %v876, %v1182
        %v1184 = vpop.f32.mrb[0].mxu0
        %v1185 = vadd.f32 %v872, %v1184
        %v1186 = vpop.f32.mrb[0].mxu0
        %v1187 = vadd.f32 %v876, %v1186
        %1188 = vmatprep.mubr.bf16.mxu0 0
        %1189 = vmatmul.mubr.bf16.gmra.mrb[0].mxu0 %v935
        %v1190 = vpop.f32.mrb[0].mxu0
        %v1191 = vadd.f32 %v872, %v1190
        %v1192 = vpop.f32.mrb[0].mxu0
        %v1193 = vadd.f32 %v876, %v1192
        %v1194 = vpop.f32.mrb[0].mxu0
        %v1195 = vadd.f32 %v872, %v1194
        %v1196 = vpop.f32.mrb[0].mxu0
        %v1197 = vadd.f32 %v876, %v1196
        %1198 = vmatprep.mubr.bf16.mxu0 0
        %1199 = vmatmul.mubr.bf16.gmra.mrb[0].mxu0 %v938
        %v1200 = vpop.f32.mrb[0].mxu0
        %v1201 = vadd.f32 %v872, %v1200
        %v1202 = vpop.f32.mrb[0].mxu0
        %v1203 = vadd.f32 %v876, %v1202
        %v1204 = vpop.f32.mrb[0].mxu0
        %v1205 = vadd.f32 %v872, %v1204
        %v1206 = vpop.f32.mrb[0].mxu0
        %v1207 = vadd.f32 %v876, %v1206
        %1208 = vmatprep.mubr.bf16.mxu0 0
        %1209 = vmatmul.mubr.bf16.gmra.mrb[0].mxu0 %v941
        %v1210 = vpop.f32.mrb[0].mxu0
        %v1211 = vadd.f32 %v872, %v1210
        %v1212 = vpop.f32.mrb[0].mxu0
        %v1213 = vadd.f32 %v876, %v1212
        %v1214 = vpop.f32.mrb[0].mxu0
        %v1215 = vadd.f32 %v872, %v1214
        %v1216 = vpop.f32.mrb[0].mxu0
        %v1217 = vadd.f32 %v876, %v1216
        %1218 = vmatprep.mubr.bf16.mxu0 0
        %1219 = vmatmul.mubr.bf16.gmra.mrb[0].mxu0 %v944
        %v1220 = vpop.f32.mrb[0].mxu0
        %v1221 = vadd.f32 %v872, %v1220
        %v1222 = vpop.f32.mrb[0].mxu0
        %v1223 = vadd.f32 %v876, %v1222
        %v1224 = vpop.f32.mrb[0].mxu0
        %v1225 = vadd.f32 %v872, %v1224
        %v1226 = vpop.f32.mrb[0].mxu0
        %v1227 = vadd.f32 %v876, %v1226
        %1228 = vmatprep.mubr.bf16.mxu0 0
        %1229 = vmatmul.mubr.bf16.gmra.mrb[0].mxu0 %v947
        %v1230 = vpop.f32.mrb[0].mxu0
        %v1231 = vadd.f32 %v872, %v1230
        %v1232 = vpop.f32.mrb[0].mxu0
        %v1233 = vadd.f32 %v876, %v1232
        %v1234 = vpop.f32.mrb[0].mxu0
        %v1235 = vadd.f32 %v872, %v1234
        %v1236 = vpop.f32.mrb[0].mxu0
        %v1237 = vadd.f32 %v876, %v1236
        %1238 = vmatprep.mubr.bf16.mxu0 0
        %1239 = vmatmul.mubr.bf16.gmra.mrb[0].mxu0 %v950
        %v1240 = vpop.f32.mrb[0].mxu0
        %v1241 = vadd.f32 %v872, %v1240
        %v1242 = vpop.f32.mrb[0].mxu0
        %v1243 = vadd.f32 %v876, %v1242
        %v1244 = vpop.f32.mrb[0].mxu0
        %v1245 = vadd.f32 %v872, %v1244
        %v1246 = vpop.f32.mrb[0].mxu0
        %v1247 = vadd.f32 %v876, %v1246
        %1248 = vmatprep.mubr.bf16.mxu0 0
        %1249 = vmatmul.mubr.bf16.gmra.mrb[0].mxu0 %v953
        %v1250 = vpop.f32.mrb[0].mxu0
        %v1251 = vadd.f32 %v872, %v1250
        %v1252 = vpop.f32.mrb[0].mxu0
        %v1253 = vadd.f32 %v876, %v1252
        %v1254 = vpop.f32.mrb[0].mxu0
        %v1255 = vadd.f32 %v872, %v1254
        %v1256 = vpop.f32.mrb[0].mxu0
        %v1257 = vadd.f32 %v876, %v1256
        %1258 = vmatprep.mubr.bf16.mxu0 0
        %1259 = vmatmul.mubr.bf16.gmra.mrb[0].mxu0 %v956
        %v1260 = vpop.f32.mrb[0].mxu0
        %v1261 = vadd.f32 %v872, %v1260
        %v1262 = vpop.f32.mrb[0].mxu0
        %v1263 = vadd.f32 %v876, %v1262
        %v1264 = vpop.f32.mrb[0].mxu0
        %v1265 = vadd.f32 %v872, %v1264
        %v1266 = vpop.f32.mrb[0].mxu0
        %v1267 = vadd.f32 %v876, %v1266
        %1268 = vmatprep.mubr.bf16.mxu0 0
        %1269 = vmatmul.mubr.bf16.gmra.mrb[0].mxu0 %v959
        %v1270 = vpop.f32.mrb[0].mxu0
        %v1271 = vadd.f32 %v872, %v1270
        %v1272 = vpop.f32.mrb[0].mxu0
        %v1273 = vadd.f32 %v876, %v1272
        %v1274 = vpop.f32.mrb[0].mxu0
        %v1275 = vadd.f32 %v872, %v1274
        %v1276 = vpop.f32.mrb[0].mxu0
        %v1277 = vadd.f32 %v876, %v1276
        %1278 = vmatprep.mubr.bf16.mxu0 0
        %1279 = vmatmul.mubr.bf16.gmra.mrb[0].mxu0 %v962
        %v1280 = vpop.f32.mrb[0].mxu0
        %v1281 = vadd.f32 %v872, %v1280
        %v1282 = vpop.f32.mrb[0].mxu0
        %v1283 = vadd.f32 %v876, %v1282
        %v1284 = vpop.f32.mrb[0].mxu0
        %v1285 = vadd.f32 %v872, %v1284
        %v1286 = vpop.f32.mrb[0].mxu0
        %v1287 = vadd.f32 %v876, %v1286
        %1288 = vmatprep.mubr.bf16.mxu0 0
        %1289 = vmatmul.mubr.bf16.gmra.mrb[0].mxu0 %v965
        %v1290 = vpop.f32.mrb[0].mxu0
        %v1291 = vadd.f32 %v872, %v1290
        %v1292 = vpop.f32.mrb[0].mxu0
        %v1293 = vadd.f32 %v876, %v1292
        %v1294 = vpop.f32.mrb[0].mxu0
        %v1295 = vadd.f32 %v872, %v1294
        %v1296 = vpop.f32.mrb[0].mxu0
        %v1297 = vadd.f32 %v876, %v1296
        %1298 = vmatprep.mubr.bf16.mxu0 0
        %1299 = vmatmul.mubr.bf16.gmra.mrb[0].mxu0 %v968
        %v1300 = vpop.f32.mrb[0].mxu0
        %v1301 = vadd.f32 %v872, %v1300
        %v1302 = vpop.f32.mrb[0].mxu0
        %v1303 = vadd.f32 %v876, %v1302
        %v1304 = vpop.f32.mrb[0].mxu0
        %v1305 = vadd.f32 %v872, %v1304
        %v1306 = vpop.f32.mrb[0].mxu0
        %v1307 = vadd.f32 %v876, %v1306
        %1308 = vmatprep.mubr.bf16.mxu0 0
        %1309 = vmatmul.mubr.bf16.gmra.mrb[0].mxu0 %v971
        %v1310 = vpop.f32.mrb[0].mxu0
        %v1311 = vadd.f32 %v872, %v1310
        %v1312 = vpop.f32.mrb[0].mxu0
        %v1313 = vadd.f32 %v876, %v1312
        %v1314 = vpop.f32.mrb[0].mxu0
        %v1315 = vadd.f32 %v872, %v1314
        %v1316 = vpop.f32.mrb[0].mxu0
        %v1317 = vadd.f32 %v876, %v1316
        %1318 = vmatprep.mubr.bf16.mxu0 0
        %1319 = vmatmul.mubr.bf16.gmra.mrb[0].mxu0 %v974
        %v1320 = vpop.f32.mrb[0].mxu0
        %v1321 = vadd.f32 %v872, %v1320
        %v1322 = vpop.f32.mrb[0].mxu0
        %v1323 = vadd.f32 %v876, %v1322
        %v1324 = vpop.f32.mrb[0].mxu0
        %v1325 = vadd.f32 %v872, %v1324
        %v1326 = vpop.f32.mrb[0].mxu0
        %v1327 = vadd.f32 %v876, %v1326
        %1328 = vdwg.mxu0
        %v1329 = vmul.f32 %v1011, 0.5
        %v1330 = vmul.f32 %v1013, 0.5
        %v1331 = vmul.f32 %v1015, 0.5
        %v1332 = vmul.f32 %v1017, 0.5
        %v1333 = vmul.f32 %v1021, 0.5
        %v1334 = vmul.f32 %v1023, 0.5
        %v1335 = vmul.f32 %v1025, 0.5
        %v1336 = vmul.f32 %v1027, 0.5
        %v1337 = vmul.f32 %v1031, 0.5
        %v1338 = vmul.f32 %v1033, 0.5
        %v1339 = vmul.f32 %v1035, 0.5
        %v1340 = vmul.f32 %v1037, 0.5
        %v1341 = vmul.f32 %v1041, 0.5
        %v1342 = vmul.f32 %v1043, 0.5
        %v1343 = vmul.f32 %v1045, 0.5
        %v1344 = vmul.f32 %v1047, 0.5
        %v1345 = vmul.f32 %v1051, 0.5
        %v1346 = vmul.f32 %v1053, 0.5
        %v1347 = vmul.f32 %v1055, 0.5
        %v1348 = vmul.f32 %v1057, 0.5
        %v1349 = vmul.f32 %v1061, 0.5
        %v1350 = vmul.f32 %v1063, 0.5
        %v1351 = vmul.f32 %v1065, 0.5
        %v1352 = vmul.f32 %v1067, 0.5
        %v1353 = vmul.f32 %v1071, 0.5
        %v1354 = vmul.f32 %v1073, 0.5
        %v1355 = vmul.f32 %v1075, 0.5
        %v1356 = vmul.f32 %v1077, 0.5
        %v1357 = vmul.f32 %v1081, 0.5
        %v1358 = vmul.f32 %v1083, 0.5
        %v1359 = vmul.f32 %v1085, 0.5
        %v1360 = vmul.f32 %v1087, 0.5
        %v1361 = vmul.f32 %v1091, 0.5
        %v1362 = vmul.f32 %v1093, 0.5
        %v1363 = vmul.f32 %v1095, 0.5
        %v1364 = vmul.f32 %v1097, 0.5
        %v1365 = vmul.f32 %v1101, 0.5
        %v1366 = vmul.f32 %v1103, 0.5
        %v1367 = vmul.f32 %v1105, 0.5
        %v1368 = vmul.f32 %v1107, 0.5
        %v1369 = vmul.f32 %v1111, 0.5
        %v1370 = vmul.f32 %v1113, 0.5
        %v1371 = vmul.f32 %v1115, 0.5
        %v1372 = vmul.f32 %v1117, 0.5
        %v1373 = vmul.f32 %v1121, 0.5
        %v1374 = vmul.f32 %v1123, 0.5
        %v1375 = vmul.f32 %v1125, 0.5
        %v1376 = vmul.f32 %v1127, 0.5
        %v1377 = vmul.f32 %v1131, 0.5
        %v1378 = vmul.f32 %v1133, 0.5
        %v1379 = vmul.f32 %v1135, 0.5
        %v1380 = vmul.f32 %v1137, 0.5
        %v1381 = vmul.f32 %v1141, 0.5
        %v1382 = vmul.f32 %v1143, 0.5
        %v1383 = vmul.f32 %v1145, 0.5
        %v1384 = vmul.f32 %v1147, 0.5
        %v1385 = vmul.f32 %v1151, 0.5
        %v1386 = vmul.f32 %v1153, 0.5
        %v1387 = vmul.f32 %v1155, 0.5
        %v1388 = vmul.f32 %v1157, 0.5
        %v1389 = vmul.f32 %v1161, 0.5
        %v1390 = vmul.f32 %v1163, 0.5
        %v1391 = vmul.f32 %v1165, 0.5
        %v1392 = vmul.f32 %v1167, 0.5
        %v1393 = vmul.f32 %v1171, 0.5
        %v1394 = vmul.f32 %v1173, 0.5
        %v1395 = vmul.f32 %v1175, 0.5
        %v1396 = vmul.f32 %v1177, 0.5
        %v1397 = vmul.f32 %v1181, 0.5
        %v1398 = vmul.f32 %v1183, 0.5
        %v1399 = vmul.f32 %v1185, 0.5
        %v1400 = vmul.f32 %v1187, 0.5
        %v1401 = vmul.f32 %v1191, 0.5
        %v1402 = vmul.f32 %v1193, 0.5
        %v1403 = vmul.f32 %v1195, 0.5
        %v1404 = vmul.f32 %v1197, 0.5
        %v1405 = vmul.f32 %v1201, 0.5
        %v1406 = vmul.f32 %v1203, 0.5
        %v1407 = vmul.f32 %v1205, 0.5
        %v1408 = vmul.f32 %v1207, 0.5
        %v1409 = vmul.f32 %v1211, 0.5
        %v1410 = vmul.f32 %v1213, 0.5
        %v1411 = vmul.f32 %v1215, 0.5
        %v1412 = vmul.f32 %v1217, 0.5
        %v1413 = vmul.f32 %v1221, 0.5
        %v1414 = vmul.f32 %v1223, 0.5
        %v1415 = vmul.f32 %v1225, 0.5
        %v1416 = vmul.f32 %v1227, 0.5
        %v1417 = vmul.f32 %v1231, 0.5
        %v1418 = vmul.f32 %v1233, 0.5
        %v1419 = vmul.f32 %v1235, 0.5
        %v1420 = vmul.f32 %v1237, 0.5
        %v1421 = vmul.f32 %v1241, 0.5
        %v1422 = vmul.f32 %v1243, 0.5
        %v1423 = vmul.f32 %v1245, 0.5
        %v1424 = vmul.f32 %v1247, 0.5
        %v1425 = vmul.f32 %v1251, 0.5
        %v1426 = vmul.f32 %v1253, 0.5
        %v1427 = vmul.f32 %v1255, 0.5
        %v1428 = vmul.f32 %v1257, 0.5
        %v1429 = vmul.f32 %v1261, 0.5
        %v1430 = vmul.f32 %v1263, 0.5
        %v1431 = vmul.f32 %v1265, 0.5
        %v1432 = vmul.f32 %v1267, 0.5
        %v1433 = vmul.f32 %v1271, 0.5
        %v1434 = vmul.f32 %v1273, 0.5
        %v1435 = vmul.f32 %v1275, 0.5
        %v1436 = vmul.f32 %v1277, 0.5
        %v1437 = vmul.f32 %v1281, 0.5
        %v1438 = vmul.f32 %v1283, 0.5
        %v1439 = vmul.f32 %v1285, 0.5
        %v1440 = vmul.f32 %v1287, 0.5
        %v1441 = vmul.f32 %v1291, 0.5
        %v1442 = vmul.f32 %v1293, 0.5
        %v1443 = vmul.f32 %v1295, 0.5
        %v1444 = vmul.f32 %v1297, 0.5
        %v1445 = vmul.f32 %v1301, 0.5
        %v1446 = vmul.f32 %v1303, 0.5
        %v1447 = vmul.f32 %v1305, 0.5
        %v1448 = vmul.f32 %v1307, 0.5
        %v1449 = vmul.f32 %v1311, 0.5
        %v1450 = vmul.f32 %v1313, 0.5
        %v1451 = vmul.f32 %v1315, 0.5
        %v1452 = vmul.f32 %v1317, 0.5
        %v1453 = vmul.f32 %v1321, 0.5
        %v1454 = vmul.f32 %v1323, 0.5
        %v1455 = vmul.f32 %v1325, 0.5
        %v1456 = vmul.f32 %v1327, 0.5
        %v1457 = vtanh.pop %v1329
        %v1458 = vtanh.pop %v1330
        %v1459 = vtanh.pop %v1331
        %v1460 = vtanh.pop %v1332
        %v1461 = vtanh.pop %v1333
        %v1462 = vtanh.pop %v1334
        %v1463 = vtanh.pop %v1335
        %v1464 = vtanh.pop %v1336
        %v1465 = vtanh.pop %v1337
        %v1466 = vtanh.pop %v1338
        %v1467 = vtanh.pop %v1339
        %v1468 = vtanh.pop %v1340
        %v1469 = vtanh.pop %v1341
        %v1470 = vtanh.pop %v1342
        %v1471 = vtanh.pop %v1343
        %v1472 = vtanh.pop %v1344
        %v1473 = vtanh.pop %v1345
        %v1474 = vtanh.pop %v1346
        %v1475 = vtanh.pop %v1347
        %v1476 = vtanh.pop %v1348
        %v1477 = vtanh.pop %v1349
        %v1478 = vtanh.pop %v1350
        %v1479 = vtanh.pop %v1351
        %v1480 = vtanh.pop %v1352
        %v1481 = vtanh.pop %v1353
        %v1482 = vtanh.pop %v1354
        %v1483 = vtanh.pop %v1355
        %v1484 = vtanh.pop %v1356
        %v1485 = vtanh.pop %v1357
        %v1486 = vtanh.pop %v1358
        %v1487 = vtanh.pop %v1359
        %v1488 = vtanh.pop %v1360
        %v1489 = vtanh.pop %v1361
        %v1490 = vtanh.pop %v1362
        %v1491 = vtanh.pop %v1363
        %v1492 = vtanh.pop %v1364
        %v1493 = vtanh.pop %v1365
        %v1494 = vtanh.pop %v1366
        %v1495 = vtanh.pop %v1367
        %v1496 = vtanh.pop %v1368
        %v1497 = vtanh.pop %v1369
        %v1498 = vtanh.pop %v1370
        %v1499 = vtanh.pop %v1371
        %v1500 = vtanh.pop %v1372
        %v1501 = vtanh.pop %v1373
        %v1502 = vtanh.pop %v1374
        %v1503 = vtanh.pop %v1375
        %v1504 = vtanh.pop %v1376
        %v1505 = vtanh.pop %v1377
        %v1506 = vtanh.pop %v1378
        %v1507 = vtanh.pop %v1379
        %v1508 = vtanh.pop %v1380
        %v1509 = vtanh.pop %v1381
        %v1510 = vtanh.pop %v1382
        %v1511 = vtanh.pop %v1383
        %v1512 = vtanh.pop %v1384
        %v1513 = vtanh.pop %v1385
        %v1514 = vtanh.pop %v1386
        %v1515 = vtanh.pop %v1387
        %v1516 = vtanh.pop %v1388
        %v1517 = vtanh.pop %v1389
        %v1518 = vtanh.pop %v1390
        %v1519 = vtanh.pop %v1391
        %v1520 = vtanh.pop %v1392
        %v1521 = vtanh.pop %v1393
        %v1522 = vtanh.pop %v1394
        %v1523 = vtanh.pop %v1395
        %v1524 = vtanh.pop %v1396
        %v1525 = vtanh.pop %v1397
        %v1526 = vtanh.pop %v1398
        %v1527 = vtanh.pop %v1399
        %v1528 = vtanh.pop %v1400
        %v1529 = vtanh.pop %v1401
        %v1530 = vtanh.pop %v1402
        %v1531 = vtanh.pop %v1403
        %v1532 = vtanh.pop %v1404
        %v1533 = vtanh.pop %v1405
        %v1534 = vtanh.pop %v1406
        %v1535 = vtanh.pop %v1407
        %v1536 = vtanh.pop %v1408
        %v1537 = vtanh.pop %v1409
        %v1538 = vtanh.pop %v1410
        %v1539 = vtanh.pop %v1411
        %v1540 = vtanh.pop %v1412
        %v1541 = vtanh.pop %v1413
        %v1542 = vtanh.pop %v1414
        %v1543 = vtanh.pop %v1415
        %v1544 = vtanh.pop %v1416
        %v1545 = vtanh.pop %v1417
        %v1546 = vtanh.pop %v1418
        %v1547 = vtanh.pop %v1419
        %v1548 = vtanh.pop %v1420
        %v1549 = vtanh.pop %v1421
        %v1550 = vtanh.pop %v1422
        %v1551 = vtanh.pop %v1423
        %v1552 = vtanh.pop %v1424
        %v1553 = vtanh.pop %v1425
        %v1554 = vtanh.pop %v1426
        %v1555 = vtanh.pop %v1427
        %v1556 = vtanh.pop %v1428
        %v1557 = vtanh.pop %v1429
        %v1558 = vtanh.pop %v1430
        %v1559 = vtanh.pop %v1431
        %v1560 = vtanh.pop %v1432
        %v1561 = vtanh.pop %v1433
        %v1562 = vtanh.pop %v1434
        %v1563 = vtanh.pop %v1435
        %v1564 = vtanh.pop %v1436
        %v1565 = vtanh.pop %v1437
        %v1566 = vtanh.pop %v1438
        %v1567 = vtanh.pop %v1439
        %v1568 = vtanh.pop %v1440
        %v1569 = vtanh.pop %v1441
        %v1570 = vtanh.pop %v1442
        %v1571 = vtanh.pop %v1443
        %v1572 = vtanh.pop %v1444
        %v1573 = vtanh.pop %v1445
        %v1574 = vtanh.pop %v1446
        %v1575 = vtanh.pop %v1447
        %v1576 = vtanh.pop %v1448
        %v1577 = vtanh.pop %v1449
        %v1578 = vtanh.pop %v1450
        %v1579 = vtanh.pop %v1451
        %v1580 = vtanh.pop %v1452
        %v1581 = vtanh.pop %v1453
        %v1582 = vtanh.pop %v1454
        %v1583 = vtanh.pop %v1455
        %v1584 = vtanh.pop %v1456
        %v1585 = vmul.f32 %v1457, 0.5
        %v1586 = vmul.f32 %v1458, 0.5
        %v1587 = vmul.f32 %v1459, 0.5
        %v1588 = vmul.f32 %v1460, 0.5
        %v1589 = vmul.f32 %v1461, 0.5
        %v1590 = vmul.f32 %v1462, 0.5
        %v1591 = vmul.f32 %v1463, 0.5
        %v1592 = vmul.f32 %v1464, 0.5
        %v1593 = vmul.f32 %v1465, 0.5
        %v1594 = vmul.f32 %v1466, 0.5
        %v1595 = vmul.f32 %v1467, 0.5
        %v1596 = vmul.f32 %v1468, 0.5
        %v1597 = vmul.f32 %v1469, 0.5
        %v1598 = vmul.f32 %v1470, 0.5
        %v1599 = vmul.f32 %v1471, 0.5
        %v1600 = vmul.f32 %v1472, 0.5
        %v1601 = vmul.f32 %v1473, 0.5
        %v1602 = vmul.f32 %v1474, 0.5
        %v1603 = vmul.f32 %v1475, 0.5
        %v1604 = vmul.f32 %v1476, 0.5
        %v1605 = vmul.f32 %v1477, 0.5
        %v1606 = vmul.f32 %v1478, 0.5
        %v1607 = vmul.f32 %v1479, 0.5
        %v1608 = vmul.f32 %v1480, 0.5
        %v1609 = vmul.f32 %v1481, 0.5
        %v1610 = vmul.f32 %v1482, 0.5
        %v1611 = vmul.f32 %v1483, 0.5
        %v1612 = vmul.f32 %v1484, 0.5
        %v1613 = vmul.f32 %v1485, 0.5
        %v1614 = vmul.f32 %v1486, 0.5
        %v1615 = vmul.f32 %v1487, 0.5
        %v1616 = vmul.f32 %v1488, 0.5
        %v1617 = vmul.f32 %v1489, 0.5
        %v1618 = vmul.f32 %v1490, 0.5
        %v1619 = vmul.f32 %v1491, 0.5
        %v1620 = vmul.f32 %v1492, 0.5
        %v1621 = vmul.f32 %v1493, 0.5
        %v1622 = vmul.f32 %v1494, 0.5
        %v1623 = vmul.f32 %v1495, 0.5
        %v1624 = vmul.f32 %v1496, 0.5
        %v1625 = vmul.f32 %v1497, 0.5
        %v1626 = vmul.f32 %v1498, 0.5
        %v1627 = vmul.f32 %v1499, 0.5
        %v1628 = vmul.f32 %v1500, 0.5
        %v1629 = vmul.f32 %v1501, 0.5
        %v1630 = vmul.f32 %v1502, 0.5
        %v1631 = vmul.f32 %v1503, 0.5
        %v1632 = vmul.f32 %v1504, 0.5
        %v1633 = vmul.f32 %v1505, 0.5
        %v1634 = vmul.f32 %v1506, 0.5
        %v1635 = vmul.f32 %v1507, 0.5
        %v1636 = vmul.f32 %v1508, 0.5
        %v1637 = vmul.f32 %v1509, 0.5
        %v1638 = vmul.f32 %v1510, 0.5
        %v1639 = vmul.f32 %v1511, 0.5
        %v1640 = vmul.f32 %v1512, 0.5
        %v1641 = vmul.f32 %v1513, 0.5
        %v1642 = vmul.f32 %v1514, 0.5
        %v1643 = vmul.f32 %v1515, 0.5
        %v1644 = vmul.f32 %v1516, 0.5
        %v1645 = vmul.f32 %v1517, 0.5
        %v1646 = vmul.f32 %v1518, 0.5
        %v1647 = vmul.f32 %v1519, 0.5
        %v1648 = vmul.f32 %v1520, 0.5
        %v1649 = vmul.f32 %v1521, 0.5
        %v1650 = vmul.f32 %v1522, 0.5
        %v1651 = vmul.f32 %v1523, 0.5
        %v1652 = vmul.f32 %v1524, 0.5
        %v1653 = vmul.f32 %v1525, 0.5
        %v1654 = vmul.f32 %v1526, 0.5
        %v1655 = vmul.f32 %v1527, 0.5
        %v1656 = vmul.f32 %v1528, 0.5
        %v1657 = vmul.f32 %v1529, 0.5
        %v1658 = vmul.f32 %v1530, 0.5
        %v1659 = vmul.f32 %v1531, 0.5
        %v1660 = vmul.f32 %v1532, 0.5
        %v1661 = vmul.f32 %v1533, 0.5
        %v1662 = vmul.f32 %v1534, 0.5
        %v1663 = vmul.f32 %v1535, 0.5
        %v1664 = vmul.f32 %v1536, 0.5
        %v1665 = vmul.f32 %v1537, 0.5
        %v1666 = vmul.f32 %v1538, 0.5
        %v1667 = vmul.f32 %v1539, 0.5
        %v1668 = vmul.f32 %v1540, 0.5
        %v1669 = vmul.f32 %v1541, 0.5
        %v1670 = vmul.f32 %v1542, 0.5
        %v1671 = vmul.f32 %v1543, 0.5
        %v1672 = vmul.f32 %v1544, 0.5
        %v1673 = vmul.f32 %v1545, 0.5
        %v1674 = vmul.f32 %v1546, 0.5
        %v1675 = vmul.f32 %v1547, 0.5
        %v1676 = vmul.f32 %v1548, 0.5
        %v1677 = vmul.f32 %v1549, 0.5
        %v1678 = vmul.f32 %v1550, 0.5
        %v1679 = vmul.f32 %v1551, 0.5
        %v1680 = vmul.f32 %v1552, 0.5
        %v1681 = vmul.f32 %v1553, 0.5
        %v1682 = vmul.f32 %v1554, 0.5
        %v1683 = vmul.f32 %v1555, 0.5
        %v1684 = vmul.f32 %v1556, 0.5
        %v1685 = vmul.f32 %v1557, 0.5
        %v1686 = vmul.f32 %v1558, 0.5
        %v1687 = vmul.f32 %v1559, 0.5
        %v1688 = vmul.f32 %v1560, 0.5
        %v1689 = vmul.f32 %v1561, 0.5
        %v1690 = vmul.f32 %v1562, 0.5
        %v1691 = vmul.f32 %v1563, 0.5
        %v1692 = vmul.f32 %v1564, 0.5
        %v1693 = vmul.f32 %v1565, 0.5
        %v1694 = vmul.f32 %v1566, 0.5
        %v1695 = vmul.f32 %v1567, 0.5
        %v1696 = vmul.f32 %v1568, 0.5
        %v1697 = vmul.f32 %v1569, 0.5
        %v1698 = vmul.f32 %v1570, 0.5
        %v1699 = vmul.f32 %v1571, 0.5
        %v1700 = vmul.f32 %v1572, 0.5
        %v1701 = vmul.f32 %v1573, 0.5
        %v1702 = vmul.f32 %v1574, 0.5
        %v1703 = vmul.f32 %v1575, 0.5
        %v1704 = vmul.f32 %v1576, 0.5
        %v1705 = vmul.f32 %v1577, 0.5
        %v1706 = vmul.f32 %v1578, 0.5
        %v1707 = vmul.f32 %v1579, 0.5
        %v1708 = vmul.f32 %v1580, 0.5
        %v1709 = vmul.f32 %v1581, 0.5
        %v1710 = vmul.f32 %v1582, 0.5
        %v1711 = vmul.f32 %v1583, 0.5
        %v1712 = vmul.f32 %v1584, 0.5
        %v1713 = vadd.f32 %v1585, 0.5
        %v1714 = vadd.f32 %v1586, 0.5
        %v1715 = vadd.f32 %v1587, 0.5
        %v1716 = vadd.f32 %v1588, 0.5
        %v1717 = vadd.f32 %v1589, 0.5
        %v1718 = vadd.f32 %v1590, 0.5
        %v1719 = vadd.f32 %v1591, 0.5
        %v1720 = vadd.f32 %v1592, 0.5
        %v1721 = vadd.f32 %v1593, 0.5
        %v1722 = vadd.f32 %v1594, 0.5
        %v1723 = vadd.f32 %v1595, 0.5
        %v1724 = vadd.f32 %v1596, 0.5
        %v1725 = vadd.f32 %v1597, 0.5
        %v1726 = vadd.f32 %v1598, 0.5
        %v1727 = vadd.f32 %v1599, 0.5
        %v1728 = vadd.f32 %v1600, 0.5
        %v1729 = vadd.f32 %v1601, 0.5
        %v1730 = vadd.f32 %v1602, 0.5
        %v1731 = vadd.f32 %v1603, 0.5
        %v1732 = vadd.f32 %v1604, 0.5
        %v1733 = vadd.f32 %v1605, 0.5
        %v1734 = vadd.f32 %v1606, 0.5
        %v1735 = vadd.f32 %v1607, 0.5
        %v1736 = vadd.f32 %v1608, 0.5
        %v1737 = vadd.f32 %v1609, 0.5
        %v1738 = vadd.f32 %v1610, 0.5
        %v1739 = vadd.f32 %v1611, 0.5
        %v1740 = vadd.f32 %v1612, 0.5
        %v1741 = vadd.f32 %v1613, 0.5
        %v1742 = vadd.f32 %v1614, 0.5
        %v1743 = vadd.f32 %v1615, 0.5
        %v1744 = vadd.f32 %v1616, 0.5
        %v1745 = vadd.f32 %v1617, 0.5
        %v1746 = vadd.f32 %v1618, 0.5
        %v1747 = vadd.f32 %v1619, 0.5
        %v1748 = vadd.f32 %v1620, 0.5
        %v1749 = vadd.f32 %v1621, 0.5
        %v1750 = vadd.f32 %v1622, 0.5
        %v1751 = vadd.f32 %v1623, 0.5
        %v1752 = vadd.f32 %v1624, 0.5
        %v1753 = vadd.f32 %v1625, 0.5
        %v1754 = vadd.f32 %v1626, 0.5
        %v1755 = vadd.f32 %v1627, 0.5
        %v1756 = vadd.f32 %v1628, 0.5
        %v1757 = vadd.f32 %v1629, 0.5
        %v1758 = vadd.f32 %v1630, 0.5
        %v1759 = vadd.f32 %v1631, 0.5
        %v1760 = vadd.f32 %v1632, 0.5
        %v1761 = vadd.f32 %v1633, 0.5
        %v1762 = vadd.f32 %v1634, 0.5
        %v1763 = vadd.f32 %v1635, 0.5
        %v1764 = vadd.f32 %v1636, 0.5
        %v1765 = vadd.f32 %v1637, 0.5
        %v1766 = vadd.f32 %v1638, 0.5
        %v1767 = vadd.f32 %v1639, 0.5
        %v1768 = vadd.f32 %v1640, 0.5
        %v1769 = vadd.f32 %v1641, 0.5
        %v1770 = vadd.f32 %v1642, 0.5
        %v1771 = vadd.f32 %v1643, 0.5
        %v1772 = vadd.f32 %v1644, 0.5
        %v1773 = vadd.f32 %v1645, 0.5
        %v1774 = vadd.f32 %v1646, 0.5
        %v1775 = vadd.f32 %v1647, 0.5
        %v1776 = vadd.f32 %v1648, 0.5
        %v1777 = vadd.f32 %v1649, 0.5
        %v1778 = vadd.f32 %v1650, 0.5
        %v1779 = vadd.f32 %v1651, 0.5
        %v1780 = vadd.f32 %v1652, 0.5
        %v1781 = vadd.f32 %v1653, 0.5
        %v1782 = vadd.f32 %v1654, 0.5
        %v1783 = vadd.f32 %v1655, 0.5
        %v1784 = vadd.f32 %v1656, 0.5
        %v1785 = vadd.f32 %v1657, 0.5
        %v1786 = vadd.f32 %v1658, 0.5
        %v1787 = vadd.f32 %v1659, 0.5
        %v1788 = vadd.f32 %v1660, 0.5
        %v1789 = vadd.f32 %v1661, 0.5
        %v1790 = vadd.f32 %v1662, 0.5
        %v1791 = vadd.f32 %v1663, 0.5
        %v1792 = vadd.f32 %v1664, 0.5
        %v1793 = vadd.f32 %v1665, 0.5
        %v1794 = vadd.f32 %v1666, 0.5
        %v1795 = vadd.f32 %v1667, 0.5
        %v1796 = vadd.f32 %v1668, 0.5
        %v1797 = vadd.f32 %v1669, 0.5
        %v1798 = vadd.f32 %v1670, 0.5
        %v1799 = vadd.f32 %v1671, 0.5
        %v1800 = vadd.f32 %v1672, 0.5
        %v1801 = vadd.f32 %v1673, 0.5
        %v1802 = vadd.f32 %v1674, 0.5
        %v1803 = vadd.f32 %v1675, 0.5
        %v1804 = vadd.f32 %v1676, 0.5
        %v1805 = vadd.f32 %v1677, 0.5
        %v1806 = vadd.f32 %v1678, 0.5
        %v1807 = vadd.f32 %v1679, 0.5
        %v1808 = vadd.f32 %v1680, 0.5
        %v1809 = vadd.f32 %v1681, 0.5
        %v1810 = vadd.f32 %v1682, 0.5
        %v1811 = vadd.f32 %v1683, 0.5
        %v1812 = vadd.f32 %v1684, 0.5
        %v1813 = vadd.f32 %v1685, 0.5
        %v1814 = vadd.f32 %v1686, 0.5
        %v1815 = vadd.f32 %v1687, 0.5
        %v1816 = vadd.f32 %v1688, 0.5
        %v1817 = vadd.f32 %v1689, 0.5
        %v1818 = vadd.f32 %v1690, 0.5
        %v1819 = vadd.f32 %v1691, 0.5
        %v1820 = vadd.f32 %v1692, 0.5
        %v1821 = vadd.f32 %v1693, 0.5
        %v1822 = vadd.f32 %v1694, 0.5
        %v1823 = vadd.f32 %v1695, 0.5
        %v1824 = vadd.f32 %v1696, 0.5
        %v1825 = vadd.f32 %v1697, 0.5
        %v1826 = vadd.f32 %v1698, 0.5
        %v1827 = vadd.f32 %v1699, 0.5
        %v1828 = vadd.f32 %v1700, 0.5
        %v1829 = vadd.f32 %v1701, 0.5
        %v1830 = vadd.f32 %v1702, 0.5
        %v1831 = vadd.f32 %v1703, 0.5
        %v1832 = vadd.f32 %v1704, 0.5
        %v1833 = vadd.f32 %v1705, 0.5
        %v1834 = vadd.f32 %v1706, 0.5
        %v1835 = vadd.f32 %v1707, 0.5
        %v1836 = vadd.f32 %v1708, 0.5
        %v1837 = vadd.f32 %v1709, 0.5
        %v1838 = vadd.f32 %v1710, 0.5
        %v1839 = vadd.f32 %v1711, 0.5
        %v1840 = vadd.f32 %v1712, 0.5
        %1841 = vst [vmem:[%s231] sm:$0xff] %v1713
        %1842 = vst [vmem:[%s231 + $0x8] sm:$0xff] %v1714
        %1843 = vst [vmem:[%s231 + $0x10] sm:$0xff] %v1715
        %1844 = vst [vmem:[%s231 + $0x18] sm:$0xff] %v1716
        %1845 = vst [vmem:[%s231 + $0x20] sm:$0xff] %v1717
        %1846 = vst [vmem:[%s231 + $0x28] sm:$0xff] %v1718
        %1847 = vst [vmem:[%s231 + $0x30] sm:$0xff] %v1719
        %1848 = vst [vmem:[%s231 + $0x38] sm:$0xff] %v1720
        %1849 = vst [vmem:[%s231 + $0x40] sm:$0xff] %v1721
        %1850 = vst [vmem:[%s231 + $0x48] sm:$0xff] %v1722
        %1851 = vst [vmem:[%s231 + $0x50] sm:$0xff] %v1723
        %1852 = vst [vmem:[%s231 + $0x58] sm:$0xff] %v1724
        %1853 = vst [vmem:[%s231 + $0x60] sm:$0xff] %v1725
        %1854 = vst [vmem:[%s231 + $0x68] sm:$0xff] %v1726
        %1855 = vst [vmem:[%s231 + $0x70] sm:$0xff] %v1727
        %1856 = vst [vmem:[%s231 + $0x78] sm:$0xff] %v1728
        %1857 = vst [vmem:[%s231 + $0x80] sm:$0xff] %v1729
        %1858 = vst [vmem:[%s231 + $0x88] sm:$0xff] %v1730
        %1859 = vst [vmem:[%s231 + $0x90] sm:$0xff] %v1731
        %1860 = vst [vmem:[%s231 + $0x98] sm:$0xff] %v1732
        %1861 = vst [vmem:[%s231 + $0xa0] sm:$0xff] %v1733
        %1862 = vst [vmem:[%s231 + $0xa8] sm:$0xff] %v1734
        %1863 = vst [vmem:[%s231 + $0xb0] sm:$0xff] %v1735
        %1864 = vst [vmem:[%s231 + $0xb8] sm:$0xff] %v1736
        %1865 = vst [vmem:[%s231 + $0xc0] sm:$0xff] %v1737
        %1866 = vst [vmem:[%s231 + $0xc8] sm:$0xff] %v1738
        %1867 = vst [vmem:[%s231 + $0xd0] sm:$0xff] %v1739
        %1868 = vst [vmem:[%s231 + $0xd8] sm:$0xff] %v1740
        %1869 = vst [vmem:[%s231 + $0xe0] sm:$0xff] %v1741
        %1870 = vst [vmem:[%s231 + $0xe8] sm:$0xff] %v1742
        %1871 = vst [vmem:[%s231 + $0xf0] sm:$0xff] %v1743
        %1872 = vst [vmem:[%s231 + $0xf8] sm:$0xff] %v1744
        %1873 = vst [vmem:[%s231 + $0x100] sm:$0xff] %v1745
        %1874 = vst [vmem:[%s231 + $0x108] sm:$0xff] %v1746
        %1875 = vst [vmem:[%s231 + $0x110] sm:$0xff] %v1747
        %1876 = vst [vmem:[%s231 + $0x118] sm:$0xff] %v1748
        %1877 = vst [vmem:[%s231 + $0x120] sm:$0xff] %v1749
        %1878 = vst [vmem:[%s231 + $0x128] sm:$0xff] %v1750
        %1879 = vst [vmem:[%s231 + $0x130] sm:$0xff] %v1751
        %1880 = vst [vmem:[%s231 + $0x138] sm:$0xff] %v1752
        %1881 = vst [vmem:[%s231 + $0x140] sm:$0xff] %v1753
        %1882 = vst [vmem:[%s231 + $0x148] sm:$0xff] %v1754
        %1883 = vst [vmem:[%s231 + $0x150] sm:$0xff] %v1755
        %1884 = vst [vmem:[%s231 + $0x158] sm:$0xff] %v1756
        %1885 = vst [vmem:[%s231 + $0x160] sm:$0xff] %v1757
        %1886 = vst [vmem:[%s231 + $0x168] sm:$0xff] %v1758
        %1887 = vst [vmem:[%s231 + $0x170] sm:$0xff] %v1759
        %1888 = vst [vmem:[%s231 + $0x178] sm:$0xff] %v1760
        %1889 = vst [vmem:[%s231 + $0x180] sm:$0xff] %v1761
        %1890 = vst [vmem:[%s231 + $0x188] sm:$0xff] %v1762
        %1891 = vst [vmem:[%s231 + $0x190] sm:$0xff] %v1763
        %1892 = vst [vmem:[%s231 + $0x198] sm:$0xff] %v1764
        %1893 = vst [vmem:[%s231 + $0x1a0] sm:$0xff] %v1765
        %1894 = vst [vmem:[%s231 + $0x1a8] sm:$0xff] %v1766
        %1895 = vst [vmem:[%s231 + $0x1b0] sm:$0xff] %v1767
        %1896 = vst [vmem:[%s231 + $0x1b8] sm:$0xff] %v1768
        %1897 = vst [vmem:[%s231 + $0x1c0] sm:$0xff] %v1769
        %1898 = vst [vmem:[%s231 + $0x1c8] sm:$0xff] %v1770
        %1899 = vst [vmem:[%s231 + $0x1d0] sm:$0xff] %v1771
        %1900 = vst [vmem:[%s231 + $0x1d8] sm:$0xff] %v1772
        %1901 = vst [vmem:[%s231 + $0x1e0] sm:$0xff] %v1773
        %1902 = vst [vmem:[%s231 + $0x1e8] sm:$0xff] %v1774
        %1903 = vst [vmem:[%s231 + $0x1f0] sm:$0xff] %v1775
        %1904 = vst [vmem:[%s231 + $0x1f8] sm:$0xff] %v1776
        %1905 = vst [vmem:[%s231 + $0x200] sm:$0xff] %v1777
        %1906 = vst [vmem:[%s231 + $0x208] sm:$0xff] %v1778
        %1907 = vst [vmem:[%s231 + $0x210] sm:$0xff] %v1779
        %1908 = vst [vmem:[%s231 + $0x218] sm:$0xff] %v1780
        %1909 = vst [vmem:[%s231 + $0x220] sm:$0xff] %v1781
        %1910 = vst [vmem:[%s231 + $0x228] sm:$0xff] %v1782
        %1911 = vst [vmem:[%s231 + $0x230] sm:$0xff] %v1783
        %1912 = vst [vmem:[%s231 + $0x238] sm:$0xff] %v1784
        %1913 = vst [vmem:[%s231 + $0x240] sm:$0xff] %v1785
        %1914 = vst [vmem:[%s231 + $0x248] sm:$0xff] %v1786
        %1915 = vst [vmem:[%s231 + $0x250] sm:$0xff] %v1787
        %1916 = vst [vmem:[%s231 + $0x258] sm:$0xff] %v1788
        %1917 = vst [vmem:[%s231 + $0x260] sm:$0xff] %v1789
        %1918 = vst [vmem:[%s231 + $0x268] sm:$0xff] %v1790
        %1919 = vst [vmem:[%s231 + $0x270] sm:$0xff] %v1791
        %1920 = vst [vmem:[%s231 + $0x278] sm:$0xff] %v1792
        %1921 = vst [vmem:[%s231 + $0x280] sm:$0xff] %v1793
        %1922 = vst [vmem:[%s231 + $0x288] sm:$0xff] %v1794
        %1923 = vst [vmem:[%s231 + $0x290] sm:$0xff] %v1795
        %1924 = vst [vmem:[%s231 + $0x298] sm:$0xff] %v1796
        %1925 = vst [vmem:[%s231 + $0x2a0] sm:$0xff] %v1797
        %1926 = vst [vmem:[%s231 + $0x2a8] sm:$0xff] %v1798
        %1927 = vst [vmem:[%s231 + $0x2b0] sm:$0xff] %v1799
        %1928 = vst [vmem:[%s231 + $0x2b8] sm:$0xff] %v1800
        %1929 = vst [vmem:[%s231 + $0x2c0] sm:$0xff] %v1801
        %1930 = vst [vmem:[%s231 + $0x2c8] sm:$0xff] %v1802
        %1931 = vst [vmem:[%s231 + $0x2d0] sm:$0xff] %v1803
        %1932 = vst [vmem:[%s231 + $0x2d8] sm:$0xff] %v1804
        %1933 = vst [vmem:[%s231 + $0x2e0] sm:$0xff] %v1805
        %1934 = vst [vmem:[%s231 + $0x2e8] sm:$0xff] %v1806
        %1935 = vst [vmem:[%s231 + $0x2f0] sm:$0xff] %v1807
        %1936 = vst [vmem:[%s231 + $0x2f8] sm:$0xff] %v1808
        %1937 = vst [vmem:[%s231 + $0x300] sm:$0xff] %v1809
        %1938 = vst [vmem:[%s231 + $0x308] sm:$0xff] %v1810
        %1939 = vst [vmem:[%s231 + $0x310] sm:$0xff] %v1811
        %1940 = vst [vmem:[%s231 + $0x318] sm:$0xff] %v1812
        %1941 = vst [vmem:[%s231 + $0x320] sm:$0xff] %v1813
        %1942 = vst [vmem:[%s231 + $0x328] sm:$0xff] %v1814
        %1943 = vst [vmem:[%s231 + $0x330] sm:$0xff] %v1815
        %1944 = vst [vmem:[%s231 + $0x338] sm:$0xff] %v1816
        %1945 = vst [vmem:[%s231 + $0x340] sm:$0xff] %v1817
        %1946 = vst [vmem:[%s231 + $0x348] sm:$0xff] %v1818
        %1947 = vst [vmem:[%s231 + $0x350] sm:$0xff] %v1819
        %1948 = vst [vmem:[%s231 + $0x358] sm:$0xff] %v1820
        %1949 = vst [vmem:[%s231 + $0x360] sm:$0xff] %v1821
        %1950 = vst [vmem:[%s231 + $0x368] sm:$0xff] %v1822
        %1951 = vst [vmem:[%s231 + $0x370] sm:$0xff] %v1823
        %1952 = vst [vmem:[%s231 + $0x378] sm:$0xff] %v1824
        %1953 = vst [vmem:[%s231 + $0x380] sm:$0xff] %v1825
        %1954 = vst [vmem:[%s231 + $0x388] sm:$0xff] %v1826
        %1955 = vst [vmem:[%s231 + $0x390] sm:$0xff] %v1827
        %1956 = vst [vmem:[%s231 + $0x398] sm:$0xff] %v1828
        %1957 = vst [vmem:[%s231 + $0x3a0] sm:$0xff] %v1829
        %1958 = vst [vmem:[%s231 + $0x3a8] sm:$0xff] %v1830
        %1959 = vst [vmem:[%s231 + $0x3b0] sm:$0xff] %v1831
        %1960 = vst [vmem:[%s231 + $0x3b8] sm:$0xff] %v1832
        %1961 = vst [vmem:[%s231 + $0x3c0] sm:$0xff] %v1833
        %1962 = vst [vmem:[%s231 + $0x3c8] sm:$0xff] %v1834
        %1963 = vst [vmem:[%s231 + $0x3d0] sm:$0xff] %v1835
        %1964 = vst [vmem:[%s231 + $0x3d8] sm:$0xff] %v1836
        %1965 = vst [vmem:[%s231 + $0x3e0] sm:$0xff] %v1837
        %1966 = vst [vmem:[%s231 + $0x3e8] sm:$0xff] %v1838
        %1967 = vst [vmem:[%s231 + $0x3f0] sm:$0xff] %v1839
        %1968 = vst [vmem:[%s231 + $0x3f8] sm:$0xff] %v1840
        %s1969 = sand.u32 %s119, 1
        %s1970 = scalar_lea.sflag [#allocation4], %s1969
        %s1971 = sand.u32 %s119, 1
        %s1972 = smul.addr %s1971, 1024
        %s1973 = scalar_lea.vmem [#allocation7], %s1972
        // Predicated region
        $region45: #{tpu_custom_call.1} parent=35 // pred_check
          %p1974 = pneg %p129
        $region46: #{tpu_custom_call.1} parent=35 // pred_check_branch
          %1976 = sbr.rel (%p1974) target = $region48
        $region47: #{tpu_custom_call.1} parent=35 // pred_region
          %s1977 = smul.u32 64, %s22
          %s1979 = ssub.s32 16384, 16384
          %1980 = vsyncadd %s1970, %s1979
          %s1981 = smul.addr %s1977, 2
          %s1982 = smul.addr %s1981, 128
          %s1983 = scalar_lea.hbm %s4, %s1982
          %s1984 = sshll.u32 %s1973, 4
          %s1985 = int_to_ptr.vmem [resolvable:$true] %s1984
          %1990 = dma.vmem_to_hbm [thread:$0]  %s1985, 16384, %s1983, %s1970, 256, 256, 16
        $region48: #{tpu_custom_call.1} parent=35 // pred_fallthru
          _
      $region36: #{tpu_custom_call.1} parent=5 // pred_fallthru
        _
      %p1991 = scmp.le.s32.totalorder 2, %s17
      // Predicated region
      $region49: #{tpu_custom_call.1} parent=5 // pred_check
        %p1992 = pneg %p1991
      $region50: #{tpu_custom_call.1} parent=5 // pred_check_branch
        %1994 = sbr.rel (%p1992) target = $region52
      $region51: #{tpu_custom_call.1} parent=5 // pred_region
        %s1995 = ssub.s32 %s17, 2
        // Predicated region
        $region53: #{tpu_custom_call.1} parent=51 // pred_check
          %p1996 = pneg %p135
        $region54: #{tpu_custom_call.1} parent=51 // pred_check_branch
          %1998 = sbr.rel (%p1996) target = $region56
        $region55: #{tpu_custom_call.1} parent=51 // pred_region
          %s1999 = sand.u32 %s120, 1
          %s2000 = scalar_lea.sflag [#allocation4], %s1999
          %s2001 = sand.u32 %s120, 1
          %s2002 = smul.addr %s2001, 1024
          %s2003 = scalar_lea.vmem [#allocation7], %s2002
          %2004 = dma.done %s2000, 16384
        $region56: #{tpu_custom_call.1} parent=51 // pred_fallthru
          _
      $region52: #{tpu_custom_call.1} parent=5 // pred_fallthru
        _
    $region6: #{tpu_custom_call.1} parent=1 // loop_footer
      %s21 = sadd.s32 1, %s17
    $region7: #{tpu_custom_call.1} parent=1 // loop_footer_branch
      %16 = sbr.rel target = $region3
    $region8: #{tpu_custom_call.1} parent=1 // loop_exit
      _
    %2005 = vsyncpa [#allocation3], 1
    %s2006 = scalar_lea.sflag [#allocation3], 1
    %2007 = vsyncpa %s2006, 1
    %2008 = vsyncpa [#allocation6], 1
    %2009 = vsyncpa [#allocation4], 1
    %s2010 = scalar_lea.sflag [#allocation4], 1
    %2011 = vsyncpa %s2010, 1

</llo_original>
